<compile_context>
chip_gen: v5e
topology: v5e:2x2
jax: 0.10.0
libtpu: 0.0.40
codegen_flags: <defaults>
</compile_context>

<pallas_src>
import functools

import jax
import jax.numpy as jnp
from jax.experimental import pallas as pl
from jax.experimental.pallas import tpu as pltpu

EPS = 1e-5
VMEM_BUDGET = 48 << 20    # conservative residency budget (v7x: 64 MiB physical)


# --------------------------------------------------------------------------
# Fused kernel
# --------------------------------------------------------------------------
def _fused_kernel(x_ref, w1_ref, w2_ref, g1_ref, be1_ref, g2_ref, be2_ref,
                  o_ref, h_ref, y_ref, s1_ref, s2_ref, *, n_rows, block_rows):
    p = pl.program_id(0)                                   # phase
    i = pl.program_id(1)                                   # batch tile
    row0 = pl.multiple_of(i * block_rows, block_rows)

    # ---------------- phase 0: h = x @ w1, BN1 statistics -----------------
    @pl.when(p == 0)
    def _():
        @pl.when(i == 0)
        def _():
            s1_ref[...] = jnp.zeros_like(s1_ref)
            s2_ref[...] = jnp.zeros_like(s2_ref)

        h = jnp.dot(x_ref[...].astype(jnp.bfloat16), w1_ref[...],
                    preferred_element_type=jnp.float32)
        h_ref[pl.ds(row0, block_rows), :] = h
        s1_ref[...] += jnp.concatenate(
            [jnp.sum(h, axis=0, keepdims=True),
             jnp.sum(h * h, axis=0, keepdims=True)], axis=0)

    # --------- phase 1: bn1 -> relu -> y = . @ w2, BN2 statistics ---------
    @pl.when(p == 1)
    def _():
        @pl.when(i == 0)
        def _():
            # Finalize BN1 in place: (sum, sumsq) -> fused (scale, shift).
            mean = s1_ref[0:1, :] / n_rows
            var = jnp.maximum(s1_ref[1:2, :] / n_rows - mean * mean, 0.0)
            scale = g1_ref[...] * jax.lax.rsqrt(var + EPS)
            shift = be1_ref[...] - mean * scale
            s1_ref[...] = jnp.concatenate([scale, shift], axis=0)

        h = h_ref[pl.ds(row0, block_rows), :]
        hn = jnp.maximum(h * s1_ref[0:1, :] + s1_ref[1:2, :], 0.0)
        y = jnp.dot(hn.astype(jnp.bfloat16), w2_ref[...],
                    preferred_element_type=jnp.float32)
        y_ref[pl.ds(row0, block_rows), :] = y
        s2_ref[...] += jnp.concatenate(
            [jnp.sum(y, axis=0, keepdims=True),
             jnp.sum(y * y, axis=0, keepdims=True)], axis=0)

    # ----------------------- phase 2: bn2 -> output ------------------------
    @pl.when(p == 2)
    def _():
        @pl.when(i == 0)
        def _():
            mean = s2_ref[0:1, :] / n_rows
            var = jnp.maximum(s2_ref[1:2, :] / n_rows - mean * mean, 0.0)
            scale = g2_ref[...] * jax.lax.rsqrt(var + EPS)
            shift = be2_ref[...] - mean * scale
            s2_ref[...] = jnp.concatenate([scale, shift], axis=0)

        y = y_ref[pl.ds(row0, block_rows), :]
        o_ref[...] = (y * s2_ref[0:1, :] + s2_ref[1:2, :]).astype(o_ref.dtype)


# --------------------------------------------------------------------------
# Host-side helpers
# --------------------------------------------------------------------------
def _pick_block_rows(batch, cap=1024):
    """Largest multiple-of-8 divisor of batch that is <= cap (else batch)."""
    if batch <= cap:
        return batch
    t = cap - cap % 8
    while t >= 8:
        if batch % t == 0:
            return t
        t -= 8
    return batch   # no suitable divisor: single tile (VMEM budget check guards)


def _fused_vmem_bytes(batch, d_in, d_hid, d_out, tb):
    f4, bf2 = 4, 2
    resident = (batch * d_hid * f4 + batch * d_out * f4          # h / y scratch
                + 2 * 8 * (d_hid + d_out) * f4                   # stats (padded)
                + 2 * d_in * d_hid * bf2 + 2 * d_hid * d_out * bf2   # w1/w2 (x2)
                + 4 * 2 * 8 * max(d_hid, d_out) * f4)            # gamma / beta
    streamed = 2 * tb * (d_in + d_out) * f4                      # x / out tiles (x2)
    temps = 2 * tb * (d_hid + d_out) * f4                        # in-kernel f32 temps
    return resident + streamed + temps


# --------------------------------------------------------------------------
# Forward pass
# --------------------------------------------------------------------------
def projection_head(x, params, block_rows_cap=1024):
    """x: (B, D_in) float32.  Returns (B, D_out) float32."""
    B, d_in = x.shape
    d_hid = params["w1"].shape[1]
    d_out = params["w2"].shape[1]

    tb = _pick_block_rows(B, block_rows_cap)
    n_tiles = B // tb
    assert tb * n_tiles == B, "batch must be divisible by the chosen tile"
    if n_tiles > 1:
        assert tb % 8 == 0, "batch tile must be a multiple of 8 when tiling"

    est = _fused_vmem_bytes(B, d_in, d_hid, d_out, tb)
    if est > VMEM_BUDGET:
        # TODO(synk): streamed 3-pass fallback when h / y do not fit in VMEM.
        raise NotImplementedError(
            f"batch {B} needs ~{est >> 20} MiB VMEM residency (> budget)")
    vlim = int(min(est + est // 2 + (4 << 20), VMEM_BUDGET))

    kernel = functools.partial(_fused_kernel, n_rows=B, block_rows=tb)

    out = pl.pallas_call(
        kernel,
        grid=(3, n_tiles),                       # (phase, batch_tile)
        in_specs=[
            # x streams in only during phase 0; pinned to tile 0 afterwards.
            pl.BlockSpec((tb, d_in), lambda p, i: (jnp.where(p == 0, i, 0), 0)),
            pl.BlockSpec((d_in, d_hid), lambda p, i: (0, 0)),
            pl.BlockSpec((d_hid, d_out), lambda p, i: (0, 0)),
            pl.BlockSpec((1, d_hid), lambda p, i: (0, 0)),
            pl.BlockSpec((1, d_hid), lambda p, i: (0, 0)),
            pl.BlockSpec((1, d_out), lambda p, i: (0, 0)),
            pl.BlockSpec((1, d_out), lambda p, i: (0, 0)),
        ],
        # Output tiles only advance (and write back) during phase 2.
        out_specs=pl.BlockSpec(
            (tb, d_out), lambda p, i: (jnp.where(p == 2, i, 0), 0)),
        out_shape=jax.ShapeDtypeStruct((B, d_out), jnp.float32),
        scratch_shapes=[
            pltpu.VMEM((B, d_hid), jnp.float32),   # h, resident across phases
            pltpu.VMEM((B, d_out), jnp.float32),   # y, resident across phases
            pltpu.VMEM((2, d_hid), jnp.float32),   # BN1 (sum,sumsq)->(scale,shift)
            pltpu.VMEM((2, d_out), jnp.float32),   # BN2 (sum,sumsq)->(scale,shift)
        ],
        compiler_params=pltpu.CompilerParams(
            dimension_semantics=("arbitrary", "arbitrary"),
            vmem_limit_bytes=vlim),
    )(x, params["w1"], params["w2"],
      params["g1"], params["be1"], params["g2"], params["be2"])
    return out


# --------------------------------------------------------------------------
# Parameters / reference
# --------------------------------------------------------------------------
def init_params(key, input_dim, hidden_dim, output_dim):
    """Deterministic synthetic parameters (not a checkpoint load).

    Linear biases are intentionally omitted: a bias added right before a
    BatchNorm is exactly cancelled by the batch-mean subtraction, so the
    forward value is identical.  Linear weights are stored pre-transposed as
    (in, out) == torch weight.T, in bf16 (MXU operand dtype).  BatchNorm
    affine params stay f32.
    """
    k1, k2 = jax.random.split(key)
    w1 = (jax.random.normal(k1, (input_dim, hidden_dim), jnp.float32) * 0.05
          ).astype(jnp.bfloat16)
    w2 = (jax.random.normal(k2, (hidden_dim, output_dim), jnp.float32) * 0.05
          ).astype(jnp.bfloat16)
    g1 = jnp.ones((1, hidden_dim), jnp.float32)
    be1 = jnp.zeros((1, hidden_dim), jnp.float32)
    g2 = jnp.ones((1, output_dim), jnp.float32)
    be2 = jnp.zeros((1, output_dim), jnp.float32)
    return dict(w1=w1, w2=w2, g1=g1, be1=be1, g2=g2, be2=be2)


def reference(x, p):
    """Pure-JAX reference mirroring the kernel's precision choices
    (bf16 MXU operands, f32 accumulation, f32 BN math, f32-resident h / y)."""
    h = jnp.dot(x.astype(jnp.bfloat16), p["w1"],
                preferred_element_type=jnp.float32)
    m = jnp.mean(h, 0, keepdims=True)
    v = jnp.maximum(jnp.mean(h * h, 0, keepdims=True) - m * m, 0.0)
    s1 = p["g1"] * jax.lax.rsqrt(v + EPS)
    t1 = p["be1"] - m * s1
    hn = jnp.maximum(h * s1 + t1, 0.0)
    y = jnp.dot(hn.astype(jnp.bfloat16), p["w2"],
                preferred_element_type=jnp.float32)
    m2 = jnp.mean(y, 0, keepdims=True)
    v2 = jnp.maximum(jnp.mean(y * y, 0, keepdims=True) - m2 * m2, 0.0)
    s2 = p["g2"] * jax.lax.rsqrt(v2 + EPS)
    t2 = p["be2"] - m2 * s2
    return y * s2 + t2


if __name__ == "__main__":
    # Module-default feature dims (512 -> 256 -> 128) at a small batch.
    # block_rows_cap=128 forces a 2-tile grid so the tiled/phased path is
    # exercised even at this small size.
    B, D_IN, D_HID, D_OUT = 256, 512, 256, 128

    key = jax.random.PRNGKey(0)
    kx, kp = jax.random.split(key)
    x = jax.random.normal(kx, (B, D_IN), jnp.float32)
    params = init_params(kp, D_IN, D_HID, D_OUT)

    fwd = jax.jit(functools.partial(projection_head, block_rows_cap=128))
    out = jax.block_until_ready(fwd(x, params))

    ref = reference(x, params)
    assert out.shape == (B, D_OUT)
    assert out.dtype == jnp.float32
    max_err = float(jnp.max(jnp.abs(out - ref)))
    assert jnp.allclose(out, ref, atol=5e-3, rtol=5e-3), f"mismatch {max_err}"

    print("KERNEL_OK")
</pallas_src>

<mosaic_0001>
module attributes {stable_mosaic.version = 11 : i64} {
  func.func @_fused_kernel(%arg0: i32, %arg1: i32, %arg2: memref<128x512xf32, #tpu.memory_space<vmem>>, %arg3: memref<512x256xbf16, #tpu.memory_space<vmem>>, %arg4: memref<256x128xbf16, #tpu.memory_space<vmem>>, %arg5: memref<1x256xf32, #tpu.memory_space<vmem>>, %arg6: memref<1x256xf32, #tpu.memory_space<vmem>>, %arg7: memref<1x128xf32, #tpu.memory_space<vmem>>, %arg8: memref<1x128xf32, #tpu.memory_space<vmem>>, %arg9: memref<128x128xf32, #tpu.memory_space<vmem>>, %arg10: memref<256x256xf32, #tpu.memory_space<vmem>>, %arg11: memref<256x128xf32, #tpu.memory_space<vmem>>, %arg12: memref<2x256xf32, #tpu.memory_space<vmem>>, %arg13: memref<2x128xf32, #tpu.memory_space<vmem>>) attributes {dimension_semantics = [#tpu.dimension_semantics<arbitrary>, #tpu.dimension_semantics<arbitrary>], iteration_bounds = array<i64: 3, 2>, scalar_prefetch = 0 : i64, scratch_operands = 4 : i64, tpu.core_type = #tpu.core_type<tc>, window_params = [{transform_indices = @transform_0, window_bounds = array<i64: 128, 512>}, {pipeline_mode = #tpu.pipeline_mode<synchronous>, transform_indices = @transform_1, window_bounds = array<i64: 512, 256>}, {pipeline_mode = #tpu.pipeline_mode<synchronous>, transform_indices = @transform_2, window_bounds = array<i64: 256, 128>}, {pipeline_mode = #tpu.pipeline_mode<synchronous>, transform_indices = @transform_3, window_bounds = array<i64: 1, 256>}, {pipeline_mode = #tpu.pipeline_mode<synchronous>, transform_indices = @transform_4, window_bounds = array<i64: 1, 256>}, {pipeline_mode = #tpu.pipeline_mode<synchronous>, transform_indices = @transform_5, window_bounds = array<i64: 1, 128>}, {pipeline_mode = #tpu.pipeline_mode<synchronous>, transform_indices = @transform_6, window_bounds = array<i64: 1, 128>}, {transform_indices = @transform_7, window_bounds = array<i64: 128, 128>}]} {
    %c128_i32 = arith.constant 128 : i32
    %0 = arith.muli %arg1, %c128_i32 : i32
    %1 = tpu.assume_multiple %0, 128 : i32
    %c0_i32 = arith.constant 0 : i32
    %2 = arith.cmpi eq, %arg0, %c0_i32 : i32
    %3 = arith.extui %2 : i1 to i32
    %c0_i32_0 = arith.constant 0 : i32
    %4 = arith.cmpi ne, %3, %c0_i32_0 : i32
    scf.if %4 {
      %c0_i32_3 = arith.constant 0 : i32
      %11 = arith.cmpi eq, %arg1, %c0_i32_3 : i32
      %12 = arith.extui %11 : i1 to i32
      %c0_i32_4 = arith.constant 0 : i32
      %13 = arith.cmpi ne, %12, %c0_i32_4 : i32
      scf.if %13 {
        %cst_15 = arith.constant 0.000000e+00 : f32
        %29 = vector.broadcast %cst_15 : f32 to vector<2x256xf32>
        %c0_16 = arith.constant 0 : index
        %c0_17 = arith.constant 0 : index
        %30 = vector.load %arg12[%c0_16, %c0_17] : memref<2x256xf32, #tpu.memory_space<vmem>>, vector<2x256xf32>
        tpu.vector_store %arg12[%c0_16, %c0_17], %29 {strides = array<i32>} : memref<2x256xf32, #tpu.memory_space<vmem>>, vector<2x256xf32>,
        %cst_18 = arith.constant 0.000000e+00 : f32
        %31 = vector.broadcast %cst_18 : f32 to vector<2x128xf32>
        %c0_19 = arith.constant 0 : index
        %c0_20 = arith.constant 0 : index
        %32 = vector.load %arg13[%c0_19, %c0_20] : memref<2x128xf32, #tpu.memory_space<vmem>>, vector<2x128xf32>
        tpu.vector_store %arg13[%c0_19, %c0_20], %31 {strides = array<i32>} : memref<2x128xf32, #tpu.memory_space<vmem>>, vector<2x128xf32>,
      } else {
      }
      %c0 = arith.constant 0 : index
      %c0_5 = arith.constant 0 : index
      %14 = vector.load %arg2[%c0, %c0_5] : memref<128x512xf32, #tpu.memory_space<vmem>>, vector<128x512xf32>
      %15 = arith.truncf %14 : vector<128x512xf32> to vector<128x512xbf16>
      %c0_6 = arith.constant 0 : index
      %c0_7 = arith.constant 0 : index
      %16 = vector.load %arg3[%c0_6, %c0_7] : memref<512x256xbf16, #tpu.memory_space<vmem>>, vector<512x256xbf16>
      %cst = arith.constant dense<0.000000e+00> : vector<128x256xf32>
      %17 = tpu.matmul %15, %16, %cst {dimension_numbers = #tpu.dot_dimension_numbers<[1], [0], [0], [1], [0, 0, 1, 1], [], []>} : vector<128x512xbf16>, vector<512x256xbf16>, vector<128x256xf32> -> vector<128x256xf32>
      %18 = arith.index_cast %1 : i32 to index
      %c0_8 = arith.constant 0 : index
      %19 = vector.load %arg10[%18, %c0_8] : memref<256x256xf32, #tpu.memory_space<vmem>>, vector<128x256xf32>
      tpu.vector_store %arg10[%18, %c0_8], %17 {strides = array<i32>} : memref<256x256xf32, #tpu.memory_space<vmem>>, vector<128x256xf32>,
      %c0_9 = arith.constant 0 : index
      %c0_10 = arith.constant 0 : index
      %20 = vector.load %arg12[%c0_9, %c0_10] : memref<2x256xf32, #tpu.memory_space<vmem>>, vector<2x256xf32>
      %cst_11 = arith.constant dense<0.000000e+00> : vector<256xf32>
      %21 = vector.multi_reduction <add>, %17, %cst_11 [0] : vector<128x256xf32> to vector<256xf32>
      %22 = vector.shape_cast %21 : vector<256xf32> to vector<1x256xf32>
      %23 = arith.mulf %17, %17 : vector<128x256xf32>
      %cst_12 = arith.constant dense<0.000000e+00> : vector<256xf32>
      %24 = vector.multi_reduction <add>, %23, %cst_12 [0] : vector<128x256xf32> to vector<256xf32>
      %25 = vector.shape_cast %24 : vector<256xf32> to vector<1x256xf32>
      %26 = tpu.concatenate %22, %25 in 0 : vector<1x256xf32>, vector<1x256xf32> -> vector<2x256xf32>
      %27 = arith.addf %20, %26 : vector<2x256xf32>
      %c0_13 = arith.constant 0 : index
      %c0_14 = arith.constant 0 : index
      %28 = vector.load %arg12[%c0_13, %c0_14] : memref<2x256xf32, #tpu.memory_space<vmem>>, vector<2x256xf32>
      tpu.vector_store %arg12[%c0_13, %c0_14], %27 {strides = array<i32>} : memref<2x256xf32, #tpu.memory_space<vmem>>, vector<2x256xf32>,
    } else {
    }
    %c1_i32 = arith.constant 1 : i32
    %5 = arith.cmpi eq, %arg0, %c1_i32 : i32
    %6 = arith.extui %5 : i1 to i32
    %c0_i32_1 = arith.constant 0 : i32
    %7 = arith.cmpi ne, %6, %c0_i32_1 : i32
    scf.if %7 {
      %c0_i32_3 = arith.constant 0 : i32
      %11 = arith.cmpi eq, %arg1, %c0_i32_3 : i32
      %12 = arith.extui %11 : i1 to i32
      %c0_i32_4 = arith.constant 0 : i32
      %13 = arith.cmpi ne, %12, %c0_i32_4 : i32
      scf.if %13 {
        %c0_18 = arith.constant 0 : index
        %c0_19 = arith.constant 0 : index
        %38 = vector.load %arg12[%c0_18, %c0_19] : memref<2x256xf32, #tpu.memory_space<vmem>>, vector<1x256xf32>
        %cst_20 = arith.constant 2.560000e+02 : f32
        %39 = vector.broadcast %cst_20 : f32 to vector<1x256xf32>
        %40 = arith.divf %38, %39 : vector<1x256xf32>
        %c1_21 = arith.constant 1 : index
        %c0_22 = arith.constant 0 : index
        %41 = vector.load %arg12[%c1_21, %c0_22] : memref<2x256xf32, #tpu.memory_space<vmem>>, vector<1x256xf32>
        %cst_23 = arith.constant 2.560000e+02 : f32
        %42 = vector.broadcast %cst_23 : f32 to vector<1x256xf32>
        %43 = arith.divf %41, %42 : vector<1x256xf32>
        %44 = arith.mulf %40, %40 : vector<1x256xf32>
        %45 = arith.subf %43, %44 : vector<1x256xf32>
        %cst_24 = arith.constant 0.000000e+00 : f32
        %46 = vector.broadcast %cst_24 : f32 to vector<1x256xf32>
        %47 = arith.maximumf %45, %46 : vector<1x256xf32>
        %c0_25 = arith.constant 0 : index
        %c0_26 = arith.constant 0 : index
        %48 = vector.load %arg5[%c0_25, %c0_26] : memref<1x256xf32, #tpu.memory_space<vmem>>, vector<1x256xf32>
        %cst_27 = arith.constant 9.99999974E-6 : f32
        %49 = vector.broadcast %cst_27 : f32 to vector<1x256xf32>
        %50 = arith.addf %47, %49 : vector<1x256xf32>
        %51 = math.rsqrt %50 : vector<1x256xf32>
        %52 = arith.mulf %48, %51 : vector<1x256xf32>
        %c0_28 = arith.constant 0 : index
        %c0_29 = arith.constant 0 : index
        %53 = vector.load %arg6[%c0_28, %c0_29] : memref<1x256xf32, #tpu.memory_space<vmem>>, vector<1x256xf32>
        %54 = arith.mulf %40, %52 : vector<1x256xf32>
        %55 = arith.subf %53, %54 : vector<1x256xf32>
        %56 = tpu.concatenate %52, %55 in 0 : vector<1x256xf32>, vector<1x256xf32> -> vector<2x256xf32>
        %c0_30 = arith.constant 0 : index
        %c0_31 = arith.constant 0 : index
        %57 = vector.load %arg12[%c0_30, %c0_31] : memref<2x256xf32, #tpu.memory_space<vmem>>, vector<2x256xf32>
        tpu.vector_store %arg12[%c0_30, %c0_31], %56 {strides = array<i32>} : memref<2x256xf32, #tpu.memory_space<vmem>>, vector<2x256xf32>,
      } else {
      }
      %14 = arith.index_cast %1 : i32 to index
      %c0 = arith.constant 0 : index
      %15 = vector.load %arg10[%14, %c0] : memref<256x256xf32, #tpu.memory_space<vmem>>, vector<128x256xf32>
      %c0_5 = arith.constant 0 : index
      %c0_6 = arith.constant 0 : index
      %16 = vector.load %arg12[%c0_5, %c0_6] : memref<2x256xf32, #tpu.memory_space<vmem>>, vector<1x256xf32>
      %17 = vector.broadcast %16 : vector<1x256xf32> to vector<128x256xf32>
      %18 = arith.mulf %15, %17 : vector<128x256xf32>
      %c1 = arith.constant 1 : index
      %c0_7 = arith.constant 0 : index
      %19 = vector.load %arg12[%c1, %c0_7] : memref<2x256xf32, #tpu.memory_space<vmem>>, vector<1x256xf32>
      %20 = vector.broadcast %19 : vector<1x256xf32> to vector<128x256xf32>
      %21 = arith.addf %18, %20 : vector<128x256xf32>
      %cst = arith.constant 0.000000e+00 : f32
      %22 = vector.broadcast %cst : f32 to vector<128x256xf32>
      %23 = arith.maximumf %21, %22 : vector<128x256xf32>
      %24 = arith.truncf %23 : vector<128x256xf32> to vector<128x256xbf16>
      %c0_8 = arith.constant 0 : index
      %c0_9 = arith.constant 0 : index
      %25 = vector.load %arg4[%c0_8, %c0_9] : memref<256x128xbf16, #tpu.memory_space<vmem>>, vector<256x128xbf16>
      %cst_10 = arith.constant dense<0.000000e+00> : vector<128x128xf32>
      %26 = tpu.matmul %24, %25, %cst_10 {dimension_numbers = #tpu.dot_dimension_numbers<[1], [0], [0], [1], [0, 0, 1, 1], [], []>} : vector<128x256xbf16>, vector<256x128xbf16>, vector<128x128xf32> -> vector<128x128xf32>
      %27 = arith.index_cast %1 : i32 to index
      %c0_11 = arith.constant 0 : index
      %28 = vector.load %arg11[%27, %c0_11] : memref<256x128xf32, #tpu.memory_space<vmem>>, vector<128x128xf32>
      tpu.vector_store %arg11[%27, %c0_11], %26 {strides = array<i32>} : memref<256x128xf32, #tpu.memory_space<vmem>>, vector<128x128xf32>,
      %c0_12 = arith.constant 0 : index
      %c0_13 = arith.constant 0 : index
      %29 = vector.load %arg13[%c0_12, %c0_13] : memref<2x128xf32, #tpu.memory_space<vmem>>, vector<2x128xf32>
      %cst_14 = arith.constant dense<0.000000e+00> : vector<128xf32>
      %30 = vector.multi_reduction <add>, %26, %cst_14 [0] : vector<128x128xf32> to vector<128xf32>
      %31 = vector.shape_cast %30 : vector<128xf32> to vector<1x128xf32>
      %32 = arith.mulf %26, %26 : vector<128x128xf32>
      %cst_15 = arith.constant dense<0.000000e+00> : vector<128xf32>
      %33 = vector.multi_reduction <add>, %32, %cst_15 [0] : vector<128x128xf32> to vector<128xf32>
      %34 = vector.shape_cast %33 : vector<128xf32> to vector<1x128xf32>
      %35 = tpu.concatenate %31, %34 in 0 : vector<1x128xf32>, vector<1x128xf32> -> vector<2x128xf32>
      %36 = arith.addf %29, %35 : vector<2x128xf32>
      %c0_16 = arith.constant 0 : index
      %c0_17 = arith.constant 0 : index
      %37 = vector.load %arg13[%c0_16, %c0_17] : memref<2x128xf32, #tpu.memory_space<vmem>>, vector<2x128xf32>
      tpu.vector_store %arg13[%c0_16, %c0_17], %36 {strides = array<i32>} : memref<2x128xf32, #tpu.memory_space<vmem>>, vector<2x128xf32>,
    } else {
    }
    %c2_i32 = arith.constant 2 : i32
    %8 = arith.cmpi eq, %arg0, %c2_i32 : i32
    %9 = arith.extui %8 : i1 to i32
    %c0_i32_2 = arith.constant 0 : i32
    %10 = arith.cmpi ne, %9, %c0_i32_2 : i32
    scf.if %10 {
      %c0_i32_3 = arith.constant 0 : i32
      %11 = arith.cmpi eq, %arg1, %c0_i32_3 : i32
      %12 = arith.extui %11 : i1 to i32
      %c0_i32_4 = arith.constant 0 : i32
      %13 = arith.cmpi ne, %12, %c0_i32_4 : i32
      scf.if %13 {
        %c0_10 = arith.constant 0 : index
        %c0_11 = arith.constant 0 : index
        %23 = vector.load %arg13[%c0_10, %c0_11] : memref<2x128xf32, #tpu.memory_space<vmem>>, vector<1x128xf32>
        %cst = arith.constant 2.560000e+02 : f32
        %24 = vector.broadcast %cst : f32 to vector<1x128xf32>
        %25 = arith.divf %23, %24 : vector<1x128xf32>
        %c1_12 = arith.constant 1 : index
        %c0_13 = arith.constant 0 : index
        %26 = vector.load %arg13[%c1_12, %c0_13] : memref<2x128xf32, #tpu.memory_space<vmem>>, vector<1x128xf32>
        %cst_14 = arith.constant 2.560000e+02 : f32
        %27 = vector.broadcast %cst_14 : f32 to vector<1x128xf32>
        %28 = arith.divf %26, %27 : vector<1x128xf32>
        %29 = arith.mulf %25, %25 : vector<1x128xf32>
        %30 = arith.subf %28, %29 : vector<1x128xf32>
        %cst_15 = arith.constant 0.000000e+00 : f32
        %31 = vector.broadcast %cst_15 : f32 to vector<1x128xf32>
        %32 = arith.maximumf %30, %31 : vector<1x128xf32>
        %c0_16 = arith.constant 0 : index
        %c0_17 = arith.constant 0 : index
        %33 = vector.load %arg7[%c0_16, %c0_17] : memref<1x128xf32, #tpu.memory_space<vmem>>, vector<1x128xf32>
        %cst_18 = arith.constant 9.99999974E-6 : f32
        %34 = vector.broadcast %cst_18 : f32 to vector<1x128xf32>
        %35 = arith.addf %32, %34 : vector<1x128xf32>
        %36 = math.rsqrt %35 : vector<1x128xf32>
        %37 = arith.mulf %33, %36 : vector<1x128xf32>
        %c0_19 = arith.constant 0 : index
        %c0_20 = arith.constant 0 : index
        %38 = vector.load %arg8[%c0_19, %c0_20] : memref<1x128xf32, #tpu.memory_space<vmem>>, vector<1x128xf32>
        %39 = arith.mulf %25, %37 : vector<1x128xf32>
        %40 = arith.subf %38, %39 : vector<1x128xf32>
        %41 = tpu.concatenate %37, %40 in 0 : vector<1x128xf32>, vector<1x128xf32> -> vector<2x128xf32>
        %c0_21 = arith.constant 0 : index
        %c0_22 = arith.constant 0 : index
        %42 = vector.load %arg13[%c0_21, %c0_22] : memref<2x128xf32, #tpu.memory_space<vmem>>, vector<2x128xf32>
        tpu.vector_store %arg13[%c0_21, %c0_22], %41 {strides = array<i32>} : memref<2x128xf32, #tpu.memory_space<vmem>>, vector<2x128xf32>,
      } else {
      }
      %14 = arith.index_cast %1 : i32 to index
      %c0 = arith.constant 0 : index
      %15 = vector.load %arg11[%14, %c0] : memref<256x128xf32, #tpu.memory_space<vmem>>, vector<128x128xf32>
      %c0_5 = arith.constant 0 : index
      %c0_6 = arith.constant 0 : index
      %16 = vector.load %arg13[%c0_5, %c0_6] : memref<2x128xf32, #tpu.memory_space<vmem>>, vector<1x128xf32>
      %17 = vector.broadcast %16 : vector<1x128xf32> to vector<128x128xf32>
      %18 = arith.mulf %15, %17 : vector<128x128xf32>
      %c1 = arith.constant 1 : index
      %c0_7 = arith.constant 0 : index
      %19 = vector.load %arg13[%c1, %c0_7] : memref<2x128xf32, #tpu.memory_space<vmem>>, vector<1x128xf32>
      %20 = vector.broadcast %19 : vector<1x128xf32> to vector<128x128xf32>
      %21 = arith.addf %18, %20 : vector<128x128xf32>
      %c0_8 = arith.constant 0 : index
      %c0_9 = arith.constant 0 : index
      %22 = vector.load %arg9[%c0_8, %c0_9] : memref<128x128xf32, #tpu.memory_space<vmem>>, vector<128x128xf32>
      tpu.vector_store %arg9[%c0_8, %c0_9], %21 {strides = array<i32>} : memref<128x128xf32, #tpu.memory_space<vmem>>, vector<128x128xf32>,
    } else {
    }
    return
  }
  func.func @transform_0(%arg0: i32, %arg1: i32) -> (i32, i32) {
    %c0_i32 = arith.constant 0 : i32
    %0 = arith.cmpi eq, %arg0, %c0_i32 : i32
    %c0_i32_0 = arith.constant 0 : i32
    %1 = arith.select %0, %arg1, %c0_i32_0 : i32
    %c0_i32_1 = arith.constant 0 : i32
    %c0_i32_2 = arith.constant 0 : i32
    return %1, %c0_i32_1 : i32, i32
  }
  func.func @transform_1(%arg0: i32, %arg1: i32) -> (i32, i32) {
    %c0_i32 = arith.constant 0 : i32
    %c0_i32_0 = arith.constant 0 : i32
    %c0_i32_1 = arith.constant 0 : i32
    return %c0_i32, %c0_i32_0 : i32, i32
  }
  func.func @transform_2(%arg0: i32, %arg1: i32) -> (i32, i32) {
    %c0_i32 = arith.constant 0 : i32
    %c0_i32_0 = arith.constant 0 : i32
    %c0_i32_1 = arith.constant 0 : i32
    return %c0_i32, %c0_i32_0 : i32, i32
  }
  func.func @transform_3(%arg0: i32, %arg1: i32) -> (i32, i32) {
    %c0_i32 = arith.constant 0 : i32
    %c0_i32_0 = arith.constant 0 : i32
    %c0_i32_1 = arith.constant 0 : i32
    return %c0_i32, %c0_i32_0 : i32, i32
  }
  func.func @transform_4(%arg0: i32, %arg1: i32) -> (i32, i32) {
    %c0_i32 = arith.constant 0 : i32
    %c0_i32_0 = arith.constant 0 : i32
    %c0_i32_1 = arith.constant 0 : i32
    return %c0_i32, %c0_i32_0 : i32, i32
  }
  func.func @transform_5(%arg0: i32, %arg1: i32) -> (i32, i32) {
    %c0_i32 = arith.constant 0 : i32
    %c0_i32_0 = arith.constant 0 : i32
    %c0_i32_1 = arith.constant 0 : i32
    return %c0_i32, %c0_i32_0 : i32, i32
  }
  func.func @transform_6(%arg0: i32, %arg1: i32) -> (i32, i32) {
    %c0_i32 = arith.constant 0 : i32
    %c0_i32_0 = arith.constant 0 : i32
    %c0_i32_1 = arith.constant 0 : i32
    return %c0_i32, %c0_i32_0 : i32, i32
  }
  func.func @transform_7(%arg0: i32, %arg1: i32) -> (i32, i32) {
    %c2_i32 = arith.constant 2 : i32
    %0 = arith.cmpi eq, %arg0, %c2_i32 : i32
    %c0_i32 = arith.constant 0 : i32
    %1 = arith.select %0, %arg1, %c0_i32 : i32
    %c0_i32_0 = arith.constant 0 : i32
    %c0_i32_1 = arith.constant 0 : i32
    return %1, %c0_i32_0 : i32, i32
  }
}

</mosaic_0001>

<llo_original>
// kernel: projection_head.1
$region0: #{projection_head.1}
  #allocation0 [shape = 'u32[]', space=smem, size = 0x4, offset = 0x4, fixed_abs, tag = 'smem constant byte address 0x4 - core index']
  #allocation1 [shape = 'u32[72,128]{1,0:T(1,128)}', space=vmem, size = 0x9000, scoped, tag = 'internal scratch']
  #allocation2 [shape = 'f32[256,256]{1,0:T(8,128)}', space=vmem, size = 0x40000, scoped, tag = 'scratch operand']
  #allocation3 [shape = 'f32[256,128]{1,0:T(8,128)}', space=vmem, size = 0x20000, scoped, tag = 'scratch operand']
  #allocation4 [shape = 'f32[2,256]{1,0:T(2,128)}', space=vmem, size = 0x800, scoped, tag = 'scratch operand']
  #allocation5 [shape = 'f32[2,128]{1,0:T(2,128)}', space=vmem, size = 0x400, scoped, tag = 'scratch operand']
  %s0 = inlined_call_operand.hbm [shape: f32[256,512], index: 0, kind: input, shape index: {}]
  %s1 = inlined_call_operand.hbm [shape: bf16[512,256], index: 1, kind: input, shape index: {}]
  %s2 = inlined_call_operand.hbm [shape: bf16[256,128], index: 2, kind: input, shape index: {}]
  %s3 = inlined_call_operand.vmem [shape: f32[1,256], index: 3, kind: input, shape index: {}]
  %s4 = inlined_call_operand.hbm [shape: f32[1,256], index: 4, kind: input, shape index: {}]
  %s5 = inlined_call_operand.vmem [shape: f32[1,128], index: 5, kind: input, shape index: {}]
  %s6 = inlined_call_operand.hbm [shape: f32[1,128], index: 6, kind: input, shape index: {}]
  %s7 = inlined_call_operand.hbm [shape: f32[256,128], index: 7, kind: output, shape index: {}]
  %s8 = sld [smem:[#allocation0]]
  $region105: #{projection_head.1} parent=0
    _
  %s10 = ssub.s32 1, %s8
  %s11 = scalar_select 0, %s10, %s8
  $region1: #{projection_head.1} parent=0
    #allocation6 [shape = 'u8[524288]{0}', space=vmem, size = 0x80000, scoped, tag = 'input window, operand 0']
    #allocation7 [shape = 's32[2]{0}', space=sflag, size = 0x8, scoped, tag = 'scoped memory for projection_head.1']
    #allocation8 [shape = 's32[2]{0}', space=sflag, size = 0x8, scoped, tag = 'scoped memory for projection_head.1']
    #allocation9 [shape = 'u8[262144]{0}', space=vmem, size = 0x40000, scoped, tag = 'input window, operand 1, single buffered']
    #allocation10 [shape = 's32[1]{0}', space=sflag, size = 0x4, scoped, tag = 'scoped memory for projection_head.1']
    #allocation11 [shape = 'u8[65536]{0}', space=vmem, size = 0x10000, scoped, tag = 'input window, operand 2, single buffered']
    #allocation12 [shape = 'u8[1024]{0}', space=vmem, size = 0x400, scoped, tag = 'input window, operand 4, single buffered']
    #allocation13 [shape = 's32[1]{0}', space=sflag, size = 0x4, scoped, tag = 'scoped memory for projection_head.1']
    #allocation14 [shape = 'u8[512]{0}', space=vmem, size = 0x400, scoped, tag = 'input window, operand 6, single buffered']
    #allocation15 [shape = 'u8[131072]{0}', space=vmem, size = 0x20000, scoped, tag = 'output window, operand 0']
    %12 = vsyncpa [#allocation7], 0
    %s13 = scalar_lea.sflag [#allocation7], 1
    %14 = vsyncpa %s13, 0
    %15 = vsyncpa [#allocation10], 0
    %16 = vsyncpa [#allocation13], 0
    %17 = vsyncpa [#allocation8], 0
    %s18 = scalar_lea.sflag [#allocation8], 1
    %19 = vsyncpa %s18, 0
    loop: start=0, step=1, limit=8
    $region2: #{projection_head.1} parent=1 // loop_pre_header
      _
    $region3: #{projection_head.1} parent=1 // loop_header
      %s21 = sphi 0, %s25
      %p22 = scmp.ge.s32.totalorder %s21, 8
      %s28 = sphi 0, %s40
      %s29 = sphi 0, %s36
      %s30 = sphi 0, %s28
      %s31 = sphi 0, %s29
      %s32 = sphi 0, %s30
      %s33 = sphi 0, %s31
      %s47 = sphi 0, %s49
      %s50 = sphi 0, %s47
      %s51 = sphi 0, %s50
      %s67 = sphi 0, %s51
      %s71 = sphi 0, %s71
      %s73 = sphi 0, %s71
      %s74 = sphi 0, %s73
      %s88 = sphi 0, %s74
      %s92 = sphi 0, %s92
      %s94 = sphi 0, %s92
      %s95 = sphi 0, %s94
      %s109 = sphi 0, %s95
      %s113 = sphi 0, %s113
      %s115 = sphi 0, %s113
      %s116 = sphi 0, %s115
      %s130 = sphi 0, %s116
      %s134 = sphi 0, %s134
      %s136 = sphi 0, %s134
      %s137 = sphi 0, %s136
      %s151 = sphi 0, %s137
      %s155 = sphi 0, %s155
      %s157 = sphi 0, %s155
      %s158 = sphi 0, %s157
      %s172 = sphi 0, %s158
      %s176 = sphi 0, %s176
      %s178 = sphi 0, %s176
      %s179 = sphi 0, %s178
      %s193 = sphi 0, %s179
      %s203 = sphi 0, %s205
      %s206 = sphi 0, %s203
      %s207 = sphi 0, %s206
      %s223 = sphi 0, %s207
    $region4: #{projection_head.1} parent=1 // loop_header_branch
      %24 = sbr.rel (%p22) target = $region8
    $region5: #{projection_head.1} parent=1 // loop_body
      %s26 = ssub.s32 %s21, 1
      %s27 = ssub.s32 %s21, 2
      %s34 = sadd.s32 1, %s29
      %p35 = scmp.ge.s32.totalorder %s34, 2
      %s36 = scalar_select %p35, 0, %s34
      %s37 = sadd.s32 1, %s28
      %s38 = scalar_select %p35, %s37, %s28
      %p39 = scmp.ge.s32.totalorder %s38, 3
      %s40 = scalar_select %p39, 0, %s38
      %p41 = scmp.eq.s32.totalorder %s28, 0
      %s42 = scalar_select %p41, %s29, 0
      %p43 = scmp.eq.s32.totalorder %s40, 0
      %s44 = scalar_select %p43, %s36, 0
      %s45 = ssub.s32 %s42, %s44
      %p46 = scmp.eq.s32.totalorder %s45, 0
      %s48 = sadd.s32 %s47, 1
      %s49 = scalar_select %p46, %s47, %s48
      %p52 = pneg %p46
      %p53 = scmp.eq.s32.totalorder %s21, 5
      %p54 = por %p52, %p53
      %p55 = scmp.ne.s32.totalorder %s47, %s50
      %p56 = scmp.eq.s32.totalorder %s21, 0
      %p57 = por %p55, %p56
      %p58 = scmp.ne.s32.totalorder %s47, %s50
      %p59 = scmp.eq.s32.totalorder %s26, 5
      %p60 = por %p58, %p59
      %p61 = scmp.ne.s32.totalorder %s50, %s51
      %p62 = scmp.eq.s32.totalorder %s26, 0
      %p63 = por %p61, %p62
      %p64 = scmp.ne.s32.totalorder %s50, %s51
      %p65 = scmp.eq.s32.totalorder %s27, 5
      %p66 = por %p64, %p65
      %p68 = scmp.ne.s32.totalorder %s51, %s67
      %p69 = scmp.eq.s32.totalorder %s27, 0
      %p70 = por %p68, %p69
      %s72 = sadd.s32 %s71, 1
      %p75 = scmp.eq.s32.totalorder %s21, 5
      %p76 = scmp.ne.s32.totalorder %s71, %s73
      %p77 = scmp.eq.s32.totalorder %s21, 0
      %p78 = por %p76, %p77
      %p79 = scmp.ne.s32.totalorder %s71, %s73
      %p80 = scmp.eq.s32.totalorder %s26, 5
      %p81 = por %p79, %p80
      %p82 = scmp.ne.s32.totalorder %s73, %s74
      %p83 = scmp.eq.s32.totalorder %s26, 0
      %p84 = por %p82, %p83
      %p85 = scmp.ne.s32.totalorder %s73, %s74
      %p86 = scmp.eq.s32.totalorder %s27, 5
      %p87 = por %p85, %p86
      %p89 = scmp.ne.s32.totalorder %s74, %s88
      %p90 = scmp.eq.s32.totalorder %s27, 0
      %p91 = por %p89, %p90
      %s93 = sadd.s32 %s92, 1
      %p96 = scmp.eq.s32.totalorder %s21, 5
      %p97 = scmp.ne.s32.totalorder %s92, %s94
      %p98 = scmp.eq.s32.totalorder %s21, 0
      %p99 = por %p97, %p98
      %p100 = scmp.ne.s32.totalorder %s92, %s94
      %p101 = scmp.eq.s32.totalorder %s26, 5
      %p102 = por %p100, %p101
      %p103 = scmp.ne.s32.totalorder %s94, %s95
      %p104 = scmp.eq.s32.totalorder %s26, 0
      %p105 = por %p103, %p104
      %p106 = scmp.ne.s32.totalorder %s94, %s95
      %p107 = scmp.eq.s32.totalorder %s27, 5
      %p108 = por %p106, %p107
      %p110 = scmp.ne.s32.totalorder %s95, %s109
      %p111 = scmp.eq.s32.totalorder %s27, 0
      %p112 = por %p110, %p111
      %s114 = sadd.s32 %s113, 1
      %p117 = scmp.eq.s32.totalorder %s21, 5
      %p118 = scmp.ne.s32.totalorder %s113, %s115
      %p119 = scmp.eq.s32.totalorder %s21, 0
      %p120 = por %p118, %p119
      %p121 = scmp.ne.s32.totalorder %s113, %s115
      %p122 = scmp.eq.s32.totalorder %s26, 5
      %p123 = por %p121, %p122
      %p124 = scmp.ne.s32.totalorder %s115, %s116
      %p125 = scmp.eq.s32.totalorder %s26, 0
      %p126 = por %p124, %p125
      %p127 = scmp.ne.s32.totalorder %s115, %s116
      %p128 = scmp.eq.s32.totalorder %s27, 5
      %p129 = por %p127, %p128
      %p131 = scmp.ne.s32.totalorder %s116, %s130
      %p132 = scmp.eq.s32.totalorder %s27, 0
      %p133 = por %p131, %p132
      %s135 = sadd.s32 %s134, 1
      %p138 = scmp.eq.s32.totalorder %s21, 5
      %p139 = scmp.ne.s32.totalorder %s134, %s136
      %p140 = scmp.eq.s32.totalorder %s21, 0
      %p141 = por %p139, %p140
      %p142 = scmp.ne.s32.totalorder %s134, %s136
      %p143 = scmp.eq.s32.totalorder %s26, 5
      %p144 = por %p142, %p143
      %p145 = scmp.ne.s32.totalorder %s136, %s137
      %p146 = scmp.eq.s32.totalorder %s26, 0
      %p147 = por %p145, %p146
      %p148 = scmp.ne.s32.totalorder %s136, %s137
      %p149 = scmp.eq.s32.totalorder %s27, 5
      %p150 = por %p148, %p149
      %p152 = scmp.ne.s32.totalorder %s137, %s151
      %p153 = scmp.eq.s32.totalorder %s27, 0
      %p154 = por %p152, %p153
      %s156 = sadd.s32 %s155, 1
      %p159 = scmp.eq.s32.totalorder %s21, 5
      %p160 = scmp.ne.s32.totalorder %s155, %s157
      %p161 = scmp.eq.s32.totalorder %s21, 0
      %p162 = por %p160, %p161
      %p163 = scmp.ne.s32.totalorder %s155, %s157
      %p164 = scmp.eq.s32.totalorder %s26, 5
      %p165 = por %p163, %p164
      %p166 = scmp.ne.s32.totalorder %s157, %s158
      %p167 = scmp.eq.s32.totalorder %s26, 0
      %p168 = por %p166, %p167
      %p169 = scmp.ne.s32.totalorder %s157, %s158
      %p170 = scmp.eq.s32.totalorder %s27, 5
      %p171 = por %p169, %p170
      %p173 = scmp.ne.s32.totalorder %s158, %s172
      %p174 = scmp.eq.s32.totalorder %s27, 0
      %p175 = por %p173, %p174
      %s177 = sadd.s32 %s176, 1
      %p180 = scmp.eq.s32.totalorder %s21, 5
      %p181 = scmp.ne.s32.totalorder %s176, %s178
      %p182 = scmp.eq.s32.totalorder %s21, 0
      %p183 = por %p181, %p182
      %p184 = scmp.ne.s32.totalorder %s176, %s178
      %p185 = scmp.eq.s32.totalorder %s26, 5
      %p186 = por %p184, %p185
      %p187 = scmp.ne.s32.totalorder %s178, %s179
      %p188 = scmp.eq.s32.totalorder %s26, 0
      %p189 = por %p187, %p188
      %p190 = scmp.ne.s32.totalorder %s178, %s179
      %p191 = scmp.eq.s32.totalorder %s27, 5
      %p192 = por %p190, %p191
      %p194 = scmp.ne.s32.totalorder %s179, %s193
      %p195 = scmp.eq.s32.totalorder %s27, 0
      %p196 = por %p194, %p195
      %p197 = scmp.eq.s32.totalorder %s28, 2
      %s198 = scalar_select %p197, %s29, 0
      %p199 = scmp.eq.s32.totalorder %s40, 2
      %s200 = scalar_select %p199, %s36, 0
      %s201 = ssub.s32 %s198, %s200
      %p202 = scmp.eq.s32.totalorder %s201, 0
      %s204 = sadd.s32 %s203, 1
      %s205 = scalar_select %p202, %s203, %s204
      %p208 = pneg %p202
      %p209 = scmp.eq.s32.totalorder %s21, 5
      %p210 = por %p208, %p209
      %p211 = scmp.ne.s32.totalorder %s203, %s206
      %p212 = scmp.eq.s32.totalorder %s21, 0
      %p213 = por %p211, %p212
      %p214 = scmp.ne.s32.totalorder %s203, %s206
      %p215 = scmp.eq.s32.totalorder %s26, 5
      %p216 = por %p214, %p215
      %p217 = scmp.ne.s32.totalorder %s206, %s207
      %p218 = scmp.eq.s32.totalorder %s26, 0
      %p219 = por %p217, %p218
      %p220 = scmp.ne.s32.totalorder %s206, %s207
      %p221 = scmp.eq.s32.totalorder %s27, 5
      %p222 = por %p220, %p221
      %p224 = scmp.ne.s32.totalorder %s207, %s223
      %p225 = scmp.eq.s32.totalorder %s27, 0
      %p226 = por %p224, %p225
      %p227 = scmp.le.s32.totalorder 1, %s21
      %p228 = scmp.lt.s32.totalorder %s21, 7
      %p229 = pnand %p227, %p228
      %p230 = pneg %p229
      // Predicated region
      $region9: #{projection_head.1} parent=5 // pred_check
        _
      $region10: #{projection_head.1} parent=5 // pred_check_branch
        %232 = sbr.rel (%p229) target = $region12
      $region11: #{projection_head.1} parent=5 // pred_region
        %s233 = ssub.s32 %s21, 1
        // Predicated region
        $region13: #{projection_head.1} parent=11 // pred_check
          %p234 = pneg %p84
        $region14: #{projection_head.1} parent=11 // pred_check_branch
          %236 = sbr.rel (%p234) target = $region16
        $region15: #{projection_head.1} parent=11 // pred_region
          %238 = vsyncadd [#allocation10], 0
          %s239 = sshll.u32 %s1, 4
          %s240 = int_to_ptr.hbm [resolvable:$true] %s239
          %s241 = sshll.u32 [#allocation9], 4
          %s242 = int_to_ptr.vmem [resolvable:$true] %s241
          %247 = dma.hbm_to_vmem [thread:$0]  %s240, 8192, %s242, [#allocation10], 128, 128, 8
        $region16: #{projection_head.1} parent=11 // pred_fallthru
          _
        // Predicated region
        $region17: #{projection_head.1} parent=11 // pred_check
          %p248 = pneg %p105
        $region18: #{projection_head.1} parent=11 // pred_check_branch
          %250 = sbr.rel (%p248) target = $region20
        $region19: #{projection_head.1} parent=11 // pred_region
          %252 = vsyncadd [#allocation10], 0
          %s253 = sshll.u32 %s2, 4
          %s254 = int_to_ptr.hbm [resolvable:$true] %s253
          %s255 = sshll.u32 [#allocation11], 4
          %s256 = int_to_ptr.vmem [resolvable:$true] %s255
          %261 = dma.hbm_to_vmem [thread:$0]  %s254, 2048, %s256, [#allocation10], 64, 64, 4
        $region20: #{projection_head.1} parent=11 // pred_fallthru
          _
        // Predicated region
        $region21: #{projection_head.1} parent=11 // pred_check
          %p262 = pneg %p126
        $region22: #{projection_head.1} parent=11 // pred_check_branch
          %264 = sbr.rel (%p262) target = $region24
        $region23: #{projection_head.1} parent=11 // pred_region
          _
        $region24: #{projection_head.1} parent=11 // pred_fallthru
          _
        // Predicated region
        $region25: #{projection_head.1} parent=11 // pred_check
          %p265 = pneg %p147
        $region26: #{projection_head.1} parent=11 // pred_check_branch
          %267 = sbr.rel (%p265) target = $region28
        $region27: #{projection_head.1} parent=11 // pred_region
          %269 = vsyncadd [#allocation13], 0
          %s271 = sshll.u32 %s4, 4
          %s272 = int_to_ptr.hbm [resolvable:$true] %s271
          %s273 = sshll.u32 [#allocation12], 4
          %s274 = int_to_ptr.vmem [resolvable:$true] %s273
          %276 = dma.hbm_to_vmem [thread:$0]  %s272, 32, %s274, [#allocation13]
        $region28: #{projection_head.1} parent=11 // pred_fallthru
          _
        // Predicated region
        $region29: #{projection_head.1} parent=11 // pred_check
          %p277 = pneg %p168
        $region30: #{projection_head.1} parent=11 // pred_check_branch
          %279 = sbr.rel (%p277) target = $region32
        $region31: #{projection_head.1} parent=11 // pred_region
          _
        $region32: #{projection_head.1} parent=11 // pred_fallthru
          _
        // Predicated region
        $region33: #{projection_head.1} parent=11 // pred_check
          %p280 = pneg %p189
        $region34: #{projection_head.1} parent=11 // pred_check_branch
          %282 = sbr.rel (%p280) target = $region36
        $region35: #{projection_head.1} parent=11 // pred_region
          %284 = vsyncadd [#allocation13], 0
          %s286 = sshll.u32 %s6, 4
          %s287 = int_to_ptr.hbm [resolvable:$true] %s286
          %s288 = sshll.u32 [#allocation14], 4
          %s289 = int_to_ptr.vmem [resolvable:$true] %s288
          %291 = dma.hbm_to_vmem [thread:$0]  %s287, 16, %s289, [#allocation13]
        $region36: #{projection_head.1} parent=11 // pred_fallthru
          _
      $region12: #{projection_head.1} parent=5 // pred_fallthru
        _
      %p292 = scmp.lt.s32.totalorder %s21, 6
      // Predicated region
      $region37: #{projection_head.1} parent=5 // pred_check
        %p293 = pneg %p292
      $region38: #{projection_head.1} parent=5 // pred_check_branch
        %295 = sbr.rel (%p293) target = $region40
      $region39: #{projection_head.1} parent=5 // pred_region
        // Predicated region
        $region41: #{projection_head.1} parent=39 // pred_check
          %p296 = pneg %p57
        $region42: #{projection_head.1} parent=39 // pred_check_branch
          %298 = sbr.rel (%p296) target = $region44
        $region43: #{projection_head.1} parent=39 // pred_region
          %s299 = sand.u32 %s47, 1
          %s300 = scalar_lea.sflag [#allocation7], %s299
          %s301 = sand.u32 %s47, 1
          %s302 = smul.addr %s301, 512
          %s303 = scalar_lea.vmem [#allocation6], %s302
          %p304 = scmp.eq.s32.totalorder %s28, 0
          %s305 = scalar_select %p304, %s29, 0
          %s306 = smul.u32 16, %s305
          %308 = vsyncadd %s300, 0
          %s309 = smul.addr %s306, 4
          %s310 = smul.addr %s309, 8
          %s311 = scalar_lea.hbm %s0, %s310
          %s312 = sshll.u32 %s311, 4
          %s313 = int_to_ptr.hbm [resolvable:$true] %s312
          %s314 = sshll.u32 %s303, 4
          %s315 = int_to_ptr.vmem [resolvable:$true] %s314
          %320 = dma.hbm_to_vmem [thread:$0]  %s313, 8192, %s315, %s300, 512, 512, 32
        $region44: #{projection_head.1} parent=39 // pred_fallthru
          _
      $region40: #{projection_head.1} parent=5 // pred_fallthru
        _
      %p321 = scmp.le.s32.totalorder 1, %s21
      %p322 = scmp.lt.s32.totalorder %s21, 7
      %p323 = pnand %p321, %p322
      %p324 = pneg %p323
      // Predicated region
      $region45: #{projection_head.1} parent=5 // pred_check
        _
      $region46: #{projection_head.1} parent=5 // pred_check_branch
        %326 = sbr.rel (%p323) target = $region48
      $region47: #{projection_head.1} parent=5 // pred_region
        %s327 = ssub.s32 %s21, 1
        %s328 = sand.u32 %s50, 1
        %s329 = scalar_lea.sflag [#allocation7], %s328
        %s330 = sand.u32 %s50, 1
        %s331 = smul.addr %s330, 512
        %s332 = scalar_lea.vmem [#allocation6], %s331
        // Predicated region
        $region49: #{projection_head.1} parent=47 // pred_check
          %p333 = pneg %p63
        $region50: #{projection_head.1} parent=47 // pred_check_branch
          %335 = sbr.rel (%p333) target = $region52
        $region51: #{projection_head.1} parent=47 // pred_region
          %337 = dma.done %s329, 8192
        $region52: #{projection_head.1} parent=47 // pred_fallthru
          _
        // Predicated region
        $region53: #{projection_head.1} parent=47 // pred_check
          %p338 = pneg %p84
        $region54: #{projection_head.1} parent=47 // pred_check_branch
          %340 = sbr.rel (%p338) target = $region56
        $region55: #{projection_head.1} parent=47 // pred_region
          %342 = dma.done [#allocation10], 8192
        $region56: #{projection_head.1} parent=47 // pred_fallthru
          _
        // Predicated region
        $region57: #{projection_head.1} parent=47 // pred_check
          %p343 = pneg %p105
        $region58: #{projection_head.1} parent=47 // pred_check_branch
          %345 = sbr.rel (%p343) target = $region60
        $region59: #{projection_head.1} parent=47 // pred_region
          %347 = dma.done [#allocation10], 2048
        $region60: #{projection_head.1} parent=47 // pred_fallthru
          _
        // Predicated region
        $region61: #{projection_head.1} parent=47 // pred_check
          %p348 = pneg %p147
        $region62: #{projection_head.1} parent=47 // pred_check_branch
          %350 = sbr.rel (%p348) target = $region64
        $region63: #{projection_head.1} parent=47 // pred_region
          %352 = dma.done [#allocation13], 32
        $region64: #{projection_head.1} parent=47 // pred_fallthru
          _
        // Predicated region
        $region65: #{projection_head.1} parent=47 // pred_check
          %p353 = pneg %p189
        $region66: #{projection_head.1} parent=47 // pred_check_branch
          %355 = sbr.rel (%p353) target = $region68
        $region67: #{projection_head.1} parent=47 // pred_region
          %357 = dma.done [#allocation13], 16
        $region68: #{projection_head.1} parent=47 // pred_fallthru
          _
        %s358 = sand.u32 %s50, 1
        %s359 = scalar_lea.sflag [#allocation7], %s358
        %s360 = sand.u32 %s50, 1
        %s361 = smul.addr %s360, 512
        %s362 = scalar_lea.vmem [#allocation6], %s361
        %p363 = pneg %p63
        %p364 = pneg %p60
        %p365 = pneg %p84
        %p366 = pneg %p81
        %p367 = pneg %p105
        %p368 = pneg %p102
        %p369 = pneg %p126
        %p370 = pneg %p123
        %p371 = pneg %p147
        %p372 = pneg %p144
        %p373 = pneg %p168
        %p374 = pneg %p165
        %p375 = pneg %p189
        %p376 = pneg %p186
        %p377 = pneg %p219
        %p378 = pneg %p216
        %s379 = sand.u32 %s206, 1
        %s380 = scalar_lea.sflag [#allocation8], %s379
        %s381 = sand.u32 %s206, 1
        %s382 = smul.addr %s381, 128
        %s383 = scalar_lea.vmem [#allocation15], %s382
        %p384 = scmp.eq.s32.totalorder %s30, 0
        %s385 = scalar_select %p384, %s31, 0
        %s386 = smul.u32 16, %s385
        %p387 = scmp.eq.s32.totalorder %s30, 2
        %s388 = scalar_select %p387, %s31, 0
        %s389 = smul.u32 16, %s388
        %s390 = smul.u32 %s31, 128
        %p391 = scmp.eq.s32.totalorder %s30, 0
        // Predicated region
        $region69: #{projection_head.1} parent=47 // pred_check
          %p392 = pneg %p391
        $region70: #{projection_head.1} parent=47 // pred_check_branch
          %394 = sbr.rel (%p392) target = $region72
        $region71: #{projection_head.1} parent=47 // pred_region
          %p395 = scmp.eq.s32.totalorder %s31, 0
          // Predicated region
          $region73: #{projection_head.1} parent=71 // pred_check
            %p396 = pneg %p395
          $region74: #{projection_head.1} parent=71 // pred_check_branch
            %398 = sbr.rel (%p396) target = $region76
          $region75: #{projection_head.1} parent=71 // pred_region
            %399 = vst [vmem:[#allocation4] sm:$0xf] 0.0
            %400 = vst [vmem:[#allocation5] sm:$0x3] 0.0
          $region76: #{projection_head.1} parent=71 // pred_fallthru
            _
          %v401 = vld [vmem:[%s332] sm:$0xff]
          %v402 = vld [vmem:[%s332 + $0x8] sm:$0xff]
          %v403 = vld [vmem:[%s332 + $0x10] sm:$0xff]
          %v404 = vld [vmem:[%s332 + $0x18] sm:$0xff]
          %v405 = vld [vmem:[%s332 + $0x20] sm:$0xff]
          %v406 = vld [vmem:[%s332 + $0x28] sm:$0xff]
          %v407 = vld [vmem:[%s332 + $0x30] sm:$0xff]
          %v408 = vld [vmem:[%s332 + $0x38] sm:$0xff]
          %v409 = vld [vmem:[%s332 + $0x40] sm:$0xff]
          %v410 = vld [vmem:[%s332 + $0x48] sm:$0xff]
          %v411 = vld [vmem:[%s332 + $0x50] sm:$0xff]
          %v412 = vld [vmem:[%s332 + $0x58] sm:$0xff]
          %v413 = vld [vmem:[%s332 + $0x60] sm:$0xff]
          %v414 = vld [vmem:[%s332 + $0x68] sm:$0xff]
          %v415 = vld [vmem:[%s332 + $0x70] sm:$0xff]
          %v416 = vld [vmem:[%s332 + $0x78] sm:$0xff]
          %v417 = vld [vmem:[%s332 + $0x80] sm:$0xff]
          %v418 = vld [vmem:[%s332 + $0x88] sm:$0xff]
          %v419 = vld [vmem:[%s332 + $0x90] sm:$0xff]
          %v420 = vld [vmem:[%s332 + $0x98] sm:$0xff]
          %v421 = vld [vmem:[%s332 + $0xa0] sm:$0xff]
          %v422 = vld [vmem:[%s332 + $0xa8] sm:$0xff]
          %v423 = vld [vmem:[%s332 + $0xb0] sm:$0xff]
          %v424 = vld [vmem:[%s332 + $0xb8] sm:$0xff]
          %v425 = vld [vmem:[%s332 + $0xc0] sm:$0xff]
          %v426 = vld [vmem:[%s332 + $0xc8] sm:$0xff]
          %v427 = vld [vmem:[%s332 + $0xd0] sm:$0xff]
          %v428 = vld [vmem:[%s332 + $0xd8] sm:$0xff]
          %v429 = vld [vmem:[%s332 + $0xe0] sm:$0xff]
          %v430 = vld [vmem:[%s332 + $0xe8] sm:$0xff]
          %v431 = vld [vmem:[%s332 + $0xf0] sm:$0xff]
          %v432 = vld [vmem:[%s332 + $0xf8] sm:$0xff]
          %v433 = vld [vmem:[%s332 + $0x100] sm:$0xff]
          %v434 = vld [vmem:[%s332 + $0x108] sm:$0xff]
          %v435 = vld [vmem:[%s332 + $0x110] sm:$0xff]
          %v436 = vld [vmem:[%s332 + $0x118] sm:$0xff]
          %v437 = vld [vmem:[%s332 + $0x120] sm:$0xff]
          %v438 = vld [vmem:[%s332 + $0x128] sm:$0xff]
          %v439 = vld [vmem:[%s332 + $0x130] sm:$0xff]
          %v440 = vld [vmem:[%s332 + $0x138] sm:$0xff]
          %v441 = vld [vmem:[%s332 + $0x140] sm:$0xff]
          %v442 = vld [vmem:[%s332 + $0x148] sm:$0xff]
          %v443 = vld [vmem:[%s332 + $0x150] sm:$0xff]
          %v444 = vld [vmem:[%s332 + $0x158] sm:$0xff]
          %v445 = vld [vmem:[%s332 + $0x160] sm:$0xff]
          %v446 = vld [vmem:[%s332 + $0x168] sm:$0xff]
          %v447 = vld [vmem:[%s332 + $0x170] sm:$0xff]
          %v448 = vld [vmem:[%s332 + $0x178] sm:$0xff]
          %v449 = vld [vmem:[%s332 + $0x180] sm:$0xff]
          %v450 = vld [vmem:[%s332 + $0x188] sm:$0xff]
          %v451 = vld [vmem:[%s332 + $0x190] sm:$0xff]
          %v452 = vld [vmem:[%s332 + $0x198] sm:$0xff]
          %v453 = vld [vmem:[%s332 + $0x1a0] sm:$0xff]
          %v454 = vld [vmem:[%s332 + $0x1a8] sm:$0xff]
          %v455 = vld [vmem:[%s332 + $0x1b0] sm:$0xff]
          %v456 = vld [vmem:[%s332 + $0x1b8] sm:$0xff]
          %v457 = vld [vmem:[%s332 + $0x1c0] sm:$0xff]
          %v458 = vld [vmem:[%s332 + $0x1c8] sm:$0xff]
          %v459 = vld [vmem:[%s332 + $0x1d0] sm:$0xff]
          %v460 = vld [vmem:[%s332 + $0x1d8] sm:$0xff]
          %v461 = vld [vmem:[%s332 + $0x1e0] sm:$0xff]
          %v462 = vld [vmem:[%s332 + $0x1e8] sm:$0xff]
          %v463 = vld [vmem:[%s332 + $0x1f0] sm:$0xff]
          %v464 = vld [vmem:[%s332 + $0x1f8] sm:$0xff]
          %v465 = vpack.c.bf16 %v405, %v401
          %v466 = vpack.c.bf16 %v406, %v402
          %v467 = vpack.c.bf16 %v407, %v403
          %v468 = vpack.c.bf16 %v408, %v404
          %v469 = vpack.c.bf16 %v413, %v409
          %v470 = vpack.c.bf16 %v414, %v410
          %v471 = vpack.c.bf16 %v415, %v411
          %v472 = vpack.c.bf16 %v416, %v412
          %v473 = vpack.c.bf16 %v421, %v417
          %v474 = vpack.c.bf16 %v422, %v418
          %v475 = vpack.c.bf16 %v423, %v419
          %v476 = vpack.c.bf16 %v424, %v420
          %v477 = vpack.c.bf16 %v429, %v425
          %v478 = vpack.c.bf16 %v430, %v426
          %v479 = vpack.c.bf16 %v431, %v427
          %v480 = vpack.c.bf16 %v432, %v428
          %v481 = vpack.c.bf16 %v437, %v433
          %v482 = vpack.c.bf16 %v438, %v434
          %v483 = vpack.c.bf16 %v439, %v435
          %v484 = vpack.c.bf16 %v440, %v436
          %v485 = vpack.c.bf16 %v445, %v441
          %v486 = vpack.c.bf16 %v446, %v442
          %v487 = vpack.c.bf16 %v447, %v443
          %v488 = vpack.c.bf16 %v448, %v444
          %v489 = vpack.c.bf16 %v453, %v449
          %v490 = vpack.c.bf16 %v454, %v450
          %v491 = vpack.c.bf16 %v455, %v451
          %v492 = vpack.c.bf16 %v456, %v452
          %v493 = vpack.c.bf16 %v461, %v457
          %v494 = vpack.c.bf16 %v462, %v458
          %v495 = vpack.c.bf16 %v463, %v459
          %v496 = vpack.c.bf16 %v464, %v460
          %v497 = vld [vmem:[#allocation9] sm:$0xff]
          %v498 = vld [vmem:[#allocation9 + $0x8] sm:$0xff]
          %v499 = vld [vmem:[#allocation9 + $0x10] sm:$0xff]
          %v500 = vld [vmem:[#allocation9 + $0x18] sm:$0xff]
          %v501 = vld [vmem:[#allocation9 + $0x20] sm:$0xff]
          %v502 = vld [vmem:[#allocation9 + $0x28] sm:$0xff]
          %v503 = vld [vmem:[#allocation9 + $0x30] sm:$0xff]
          %v504 = vld [vmem:[#allocation9 + $0x38] sm:$0xff]
          %v505 = vld [vmem:[#allocation9 + $0x40] sm:$0xff]
          %v506 = vld [vmem:[#allocation9 + $0x48] sm:$0xff]
          %v507 = vld [vmem:[#allocation9 + $0x50] sm:$0xff]
          %v508 = vld [vmem:[#allocation9 + $0x58] sm:$0xff]
          %v509 = vld [vmem:[#allocation9 + $0x60] sm:$0xff]
          %v510 = vld [vmem:[#allocation9 + $0x68] sm:$0xff]
          %v511 = vld [vmem:[#allocation9 + $0x70] sm:$0xff]
          %v512 = vld [vmem:[#allocation9 + $0x78] sm:$0xff]
          %v513 = vld [vmem:[#allocation9 + $0x80] sm:$0xff]
          %v514 = vld [vmem:[#allocation9 + $0x88] sm:$0xff]
          %v515 = vld [vmem:[#allocation9 + $0x90] sm:$0xff]
          %v516 = vld [vmem:[#allocation9 + $0x98] sm:$0xff]
          %v517 = vld [vmem:[#allocation9 + $0xa0] sm:$0xff]
          %v518 = vld [vmem:[#allocation9 + $0xa8] sm:$0xff]
          %v519 = vld [vmem:[#allocation9 + $0xb0] sm:$0xff]
          %v520 = vld [vmem:[#allocation9 + $0xb8] sm:$0xff]
          %v521 = vld [vmem:[#allocation9 + $0xc0] sm:$0xff]
          %v522 = vld [vmem:[#allocation9 + $0xc8] sm:$0xff]
          %v523 = vld [vmem:[#allocation9 + $0xd0] sm:$0xff]
          %v524 = vld [vmem:[#allocation9 + $0xd8] sm:$0xff]
          %v525 = vld [vmem:[#allocation9 + $0xe0] sm:$0xff]
          %v526 = vld [vmem:[#allocation9 + $0xe8] sm:$0xff]
          %v527 = vld [vmem:[#allocation9 + $0xf0] sm:$0xff]
          %v528 = vld [vmem:[#allocation9 + $0xf8] sm:$0xff]
          %v529 = vld [vmem:[#allocation9 + $0x100] sm:$0xff]
          %v530 = vld [vmem:[#allocation9 + $0x108] sm:$0xff]
          %v531 = vld [vmem:[#allocation9 + $0x110] sm:$0xff]
          %v532 = vld [vmem:[#allocation9 + $0x118] sm:$0xff]
          %v533 = vld [vmem:[#allocation9 + $0x120] sm:$0xff]
          %v534 = vld [vmem:[#allocation9 + $0x128] sm:$0xff]
          %v535 = vld [vmem:[#allocation9 + $0x130] sm:$0xff]
          %v536 = vld [vmem:[#allocation9 + $0x138] sm:$0xff]
          %v537 = vld [vmem:[#allocation9 + $0x140] sm:$0xff]
          %v538 = vld [vmem:[#allocation9 + $0x148] sm:$0xff]
          %v539 = vld [vmem:[#allocation9 + $0x150] sm:$0xff]
          %v540 = vld [vmem:[#allocation9 + $0x158] sm:$0xff]
          %v541 = vld [vmem:[#allocation9 + $0x160] sm:$0xff]
          %v542 = vld [vmem:[#allocation9 + $0x168] sm:$0xff]
          %v543 = vld [vmem:[#allocation9 + $0x170] sm:$0xff]
          %v544 = vld [vmem:[#allocation9 + $0x178] sm:$0xff]
          %v545 = vld [vmem:[#allocation9 + $0x180] sm:$0xff]
          %v546 = vld [vmem:[#allocation9 + $0x188] sm:$0xff]
          %v547 = vld [vmem:[#allocation9 + $0x190] sm:$0xff]
          %v548 = vld [vmem:[#allocation9 + $0x198] sm:$0xff]
          %v549 = vld [vmem:[#allocation9 + $0x1a0] sm:$0xff]
          %v550 = vld [vmem:[#allocation9 + $0x1a8] sm:$0xff]
          %v551 = vld [vmem:[#allocation9 + $0x1b0] sm:$0xff]
          %v552 = vld [vmem:[#allocation9 + $0x1b8] sm:$0xff]
          %v553 = vld [vmem:[#allocation9 + $0x1c0] sm:$0xff]
          %v554 = vld [vmem:[#allocation9 + $0x1c8] sm:$0xff]
          %v555 = vld [vmem:[#allocation9 + $0x1d0] sm:$0xff]
          %v556 = vld [vmem:[#allocation9 + $0x1d8] sm:$0xff]
          %v557 = vld [vmem:[#allocation9 + $0x1e0] sm:$0xff]
          %v558 = vld [vmem:[#allocation9 + $0x1e8] sm:$0xff]
          %v559 = vld [vmem:[#allocation9 + $0x1f0] sm:$0xff]
          %v560 = vld [vmem:[#allocation9 + $0x1f8] sm:$0xff]
          %v625 = vunpack.c.l.b16 %v497
          %v626 = vunpack.c.h.b16 %v497
          %v627 = vunpack.c.l.b16 %v498
          %v628 = vunpack.c.h.b16 %v498
          %v629 = vunpack.c.l.b16 %v499
          %v630 = vunpack.c.h.b16 %v499
          %v631 = vunpack.c.l.b16 %v500
          %v632 = vunpack.c.h.b16 %v500
          %v633 = vunpack.c.l.b16 %v501
          %v634 = vunpack.c.h.b16 %v501
          %v635 = vunpack.c.l.b16 %v502
          %v636 = vunpack.c.h.b16 %v502
          %v637 = vunpack.c.l.b16 %v503
          %v638 = vunpack.c.h.b16 %v503
          %v639 = vunpack.c.l.b16 %v504
          %v640 = vunpack.c.h.b16 %v504
          %v641 = vunpack.c.l.b16 %v505
          %v642 = vunpack.c.h.b16 %v505
          %v643 = vunpack.c.l.b16 %v506
          %v644 = vunpack.c.h.b16 %v506
          %v645 = vunpack.c.l.b16 %v507
          %v646 = vunpack.c.h.b16 %v507
          %v647 = vunpack.c.l.b16 %v508
          %v648 = vunpack.c.h.b16 %v508
          %v649 = vunpack.c.l.b16 %v509
          %v650 = vunpack.c.h.b16 %v509
          %v651 = vunpack.c.l.b16 %v510
          %v652 = vunpack.c.h.b16 %v510
          %v653 = vunpack.c.l.b16 %v511
          %v654 = vunpack.c.h.b16 %v511
          %v655 = vunpack.c.l.b16 %v512
          %v656 = vunpack.c.h.b16 %v512
          %v657 = vunpack.c.l.b16 %v513
          %v658 = vunpack.c.h.b16 %v513
          %v659 = vunpack.c.l.b16 %v514
          %v660 = vunpack.c.h.b16 %v514
          %v661 = vunpack.c.l.b16 %v515
          %v662 = vunpack.c.h.b16 %v515
          %v663 = vunpack.c.l.b16 %v516
          %v664 = vunpack.c.h.b16 %v516
          %v665 = vunpack.c.l.b16 %v517
          %v666 = vunpack.c.h.b16 %v517
          %v667 = vunpack.c.l.b16 %v518
          %v668 = vunpack.c.h.b16 %v518
          %v669 = vunpack.c.l.b16 %v519
          %v670 = vunpack.c.h.b16 %v519
          %v671 = vunpack.c.l.b16 %v520
          %v672 = vunpack.c.h.b16 %v520
          %v673 = vunpack.c.l.b16 %v521
          %v674 = vunpack.c.h.b16 %v521
          %v675 = vunpack.c.l.b16 %v522
          %v676 = vunpack.c.h.b16 %v522
          %v677 = vunpack.c.l.b16 %v523
          %v678 = vunpack.c.h.b16 %v523
          %v679 = vunpack.c.l.b16 %v524
          %v680 = vunpack.c.h.b16 %v524
          %v681 = vunpack.c.l.b16 %v525
          %v682 = vunpack.c.h.b16 %v525
          %v683 = vunpack.c.l.b16 %v526
          %v684 = vunpack.c.h.b16 %v526
          %v685 = vunpack.c.l.b16 %v527
          %v686 = vunpack.c.h.b16 %v527
          %v687 = vunpack.c.l.b16 %v528
          %v688 = vunpack.c.h.b16 %v528
          %v689 = vunpack.c.l.b16 %v529
          %v690 = vunpack.c.h.b16 %v529
          %v691 = vunpack.c.l.b16 %v530
          %v692 = vunpack.c.h.b16 %v530
          %v693 = vunpack.c.l.b16 %v531
          %v694 = vunpack.c.h.b16 %v531
          %v695 = vunpack.c.l.b16 %v532
          %v696 = vunpack.c.h.b16 %v532
          %v697 = vunpack.c.l.b16 %v533
          %v698 = vunpack.c.h.b16 %v533
          %v699 = vunpack.c.l.b16 %v534
          %v700 = vunpack.c.h.b16 %v534
          %v701 = vunpack.c.l.b16 %v535
          %v702 = vunpack.c.h.b16 %v535
          %v703 = vunpack.c.l.b16 %v536
          %v704 = vunpack.c.h.b16 %v536
          %v705 = vunpack.c.l.b16 %v537
          %v706 = vunpack.c.h.b16 %v537
          %v707 = vunpack.c.l.b16 %v538
          %v708 = vunpack.c.h.b16 %v538
          %v709 = vunpack.c.l.b16 %v539
          %v710 = vunpack.c.h.b16 %v539
          %v711 = vunpack.c.l.b16 %v540
          %v712 = vunpack.c.h.b16 %v540
          %v713 = vunpack.c.l.b16 %v541
          %v714 = vunpack.c.h.b16 %v541
          %v715 = vunpack.c.l.b16 %v542
          %v716 = vunpack.c.h.b16 %v542
          %v717 = vunpack.c.l.b16 %v543
          %v718 = vunpack.c.h.b16 %v543
          %v719 = vunpack.c.l.b16 %v544
          %v720 = vunpack.c.h.b16 %v544
          %v721 = vunpack.c.l.b16 %v545
          %v722 = vunpack.c.h.b16 %v545
          %v723 = vunpack.c.l.b16 %v546
          %v724 = vunpack.c.h.b16 %v546
          %v725 = vunpack.c.l.b16 %v547
          %v726 = vunpack.c.h.b16 %v547
          %v727 = vunpack.c.l.b16 %v548
          %v728 = vunpack.c.h.b16 %v548
          %v729 = vunpack.c.l.b16 %v549
          %v730 = vunpack.c.h.b16 %v549
          %v731 = vunpack.c.l.b16 %v550
          %v732 = vunpack.c.h.b16 %v550
          %v733 = vunpack.c.l.b16 %v551
          %v734 = vunpack.c.h.b16 %v551
          %v735 = vunpack.c.l.b16 %v552
          %v736 = vunpack.c.h.b16 %v552
          %v737 = vunpack.c.l.b16 %v553
          %v738 = vunpack.c.h.b16 %v553
          %v739 = vunpack.c.l.b16 %v554
          %v740 = vunpack.c.h.b16 %v554
          %v741 = vunpack.c.l.b16 %v555
          %v742 = vunpack.c.h.b16 %v555
          %v743 = vunpack.c.l.b16 %v556
          %v744 = vunpack.c.h.b16 %v556
          %v745 = vunpack.c.l.b16 %v557
          %v746 = vunpack.c.h.b16 %v557
          %v747 = vunpack.c.l.b16 %v558
          %v748 = vunpack.c.h.b16 %v558
          %v749 = vunpack.c.l.b16 %v559
          %v750 = vunpack.c.h.b16 %v559
          %v751 = vunpack.c.l.b16 %v560
          %v752 = vunpack.c.h.b16 %v560
          %v753 = vpack.c.b16 %v627, %v625
          %v754 = vpack.c.b16 %v628, %v626
          %v755 = vpack.c.b16 %v631, %v629
          %v756 = vpack.c.b16 %v632, %v630
          %v757 = vpack.c.b16 %v635, %v633
          %v758 = vpack.c.b16 %v636, %v634
          %v759 = vpack.c.b16 %v639, %v637
          %v760 = vpack.c.b16 %v640, %v638
          %v761 = vpack.c.b16 %v643, %v641
          %v762 = vpack.c.b16 %v644, %v642
          %v763 = vpack.c.b16 %v647, %v645
          %v764 = vpack.c.b16 %v648, %v646
          %v765 = vpack.c.b16 %v651, %v649
          %v766 = vpack.c.b16 %v652, %v650
          %v767 = vpack.c.b16 %v655, %v653
          %v768 = vpack.c.b16 %v656, %v654
          %v769 = vpack.c.b16 %v659, %v657
          %v770 = vpack.c.b16 %v660, %v658
          %v771 = vpack.c.b16 %v663, %v661
          %v772 = vpack.c.b16 %v664, %v662
          %v773 = vpack.c.b16 %v667, %v665
          %v774 = vpack.c.b16 %v668, %v666
          %v775 = vpack.c.b16 %v671, %v669
          %v776 = vpack.c.b16 %v672, %v670
          %v777 = vpack.c.b16 %v675, %v673
          %v778 = vpack.c.b16 %v676, %v674
          %v779 = vpack.c.b16 %v679, %v677
          %v780 = vpack.c.b16 %v680, %v678
          %v781 = vpack.c.b16 %v683, %v681
          %v782 = vpack.c.b16 %v684, %v682
          %v783 = vpack.c.b16 %v687, %v685
          %v784 = vpack.c.b16 %v688, %v686
          %v785 = vpack.c.b16 %v691, %v689
          %v786 = vpack.c.b16 %v692, %v690
          %v787 = vpack.c.b16 %v695, %v693
          %v788 = vpack.c.b16 %v696, %v694
          %v789 = vpack.c.b16 %v699, %v697
          %v790 = vpack.c.b16 %v700, %v698
          %v791 = vpack.c.b16 %v703, %v701
          %v792 = vpack.c.b16 %v704, %v702
          %v793 = vpack.c.b16 %v707, %v705
          %v794 = vpack.c.b16 %v708, %v706
          %v795 = vpack.c.b16 %v711, %v709
          %v796 = vpack.c.b16 %v712, %v710
          %v797 = vpack.c.b16 %v715, %v713
          %v798 = vpack.c.b16 %v716, %v714
          %v799 = vpack.c.b16 %v719, %v717
          %v800 = vpack.c.b16 %v720, %v718
          %v801 = vpack.c.b16 %v723, %v721
          %v802 = vpack.c.b16 %v724, %v722
          %v803 = vpack.c.b16 %v727, %v725
          %v804 = vpack.c.b16 %v728, %v726
          %v805 = vpack.c.b16 %v731, %v729
          %v806 = vpack.c.b16 %v732, %v730
          %v807 = vpack.c.b16 %v735, %v733
          %v808 = vpack.c.b16 %v736, %v734
          %v809 = vpack.c.b16 %v739, %v737
          %v810 = vpack.c.b16 %v740, %v738
          %v811 = vpack.c.b16 %v743, %v741
          %v812 = vpack.c.b16 %v744, %v742
          %v813 = vpack.c.b16 %v747, %v745
          %v814 = vpack.c.b16 %v748, %v746
          %v815 = vpack.c.b16 %v751, %v749
          %v816 = vpack.c.b16 %v752, %v750
          %881 = vmatpush.bf16.msra.mxu0 %v767
          %882 = vmatpush.bf16.msra.mxu0 %v765
          %883 = vmatpush.bf16.msra.mxu0 %v763
          %884 = vmatpush.bf16.msra.mxu0 %v761
          %885 = vmatpush.bf16.msra.mxu0 %v759
          %886 = vmatpush.bf16.msra.mxu0 %v757
          %887 = vmatpush.bf16.msra.mxu0 %v755
          %888 = vmatpush.bf16.msra.mxu0 %v753
          %889 = vmatmul.bf16.gmra.mxu0 %v465
          %v890 = vpop.f32.mrf.mxu0
          %v891 = vadd.f32 0.0, %v890
          %v892 = vpop.f32.mrf.mxu0
          %v893 = vadd.f32 0.0, %v892
          %894 = vmatmul.bf16.gmra.mxu0 %v469
          %v895 = vpop.f32.mrf.mxu0
          %v896 = vadd.f32 0.0, %v895
          %v897 = vpop.f32.mrf.mxu0
          %v898 = vadd.f32 0.0, %v897
          %899 = vmatmul.bf16.gmra.mxu0 %v473
          %v900 = vpop.f32.mrf.mxu0
          %v901 = vadd.f32 0.0, %v900
          %v902 = vpop.f32.mrf.mxu0
          %v903 = vadd.f32 0.0, %v902
          %904 = vmatmul.bf16.gmra.mxu0 %v477
          %v905 = vpop.f32.mrf.mxu0
          %v906 = vadd.f32 0.0, %v905
          %v907 = vpop.f32.mrf.mxu0
          %v908 = vadd.f32 0.0, %v907
          %909 = vmatmul.bf16.gmra.mxu0 %v481
          %v910 = vpop.f32.mrf.mxu0
          %v911 = vadd.f32 0.0, %v910
          %v912 = vpop.f32.mrf.mxu0
          %v913 = vadd.f32 0.0, %v912
          %914 = vmatmul.bf16.gmra.mxu0 %v485
          %v915 = vpop.f32.mrf.mxu0
          %v916 = vadd.f32 0.0, %v915
          %v917 = vpop.f32.mrf.mxu0
          %v918 = vadd.f32 0.0, %v917
          %919 = vmatmul.bf16.gmra.mxu0 %v489
          %v920 = vpop.f32.mrf.mxu0
          %v921 = vadd.f32 0.0, %v920
          %v922 = vpop.f32.mrf.mxu0
          %v923 = vadd.f32 0.0, %v922
          %924 = vmatmul.bf16.gmra.mxu0 %v493
          %v925 = vpop.f32.mrf.mxu0
          %v926 = vadd.f32 0.0, %v925
          %v927 = vpop.f32.mrf.mxu0
          %v928 = vadd.f32 0.0, %v927
          %929 = vdwg.mxu0
          %930 = vmatpush.bf16.msra.mxu0 %v783
          %931 = vmatpush.bf16.msra.mxu0 %v781
          %932 = vmatpush.bf16.msra.mxu0 %v779
          %933 = vmatpush.bf16.msra.mxu0 %v777
          %934 = vmatpush.bf16.msra.mxu0 %v775
          %935 = vmatpush.bf16.msra.mxu0 %v773
          %936 = vmatpush.bf16.msra.mxu0 %v771
          %937 = vmatpush.bf16.msra.mxu0 %v769
          %938 = vmatmul.bf16.gmra.mxu0 %v466
          %v939 = vpop.f32.mrf.mxu0
          %v940 = vadd.f32 %v891, %v939
          %v941 = vpop.f32.mrf.mxu0
          %v942 = vadd.f32 %v893, %v941
          %943 = vmatmul.bf16.gmra.mxu0 %v470
          %v944 = vpop.f32.mrf.mxu0
          %v945 = vadd.f32 %v896, %v944
          %v946 = vpop.f32.mrf.mxu0
          %v947 = vadd.f32 %v898, %v946
          %948 = vmatmul.bf16.gmra.mxu0 %v474
          %v949 = vpop.f32.mrf.mxu0
          %v950 = vadd.f32 %v901, %v949
          %v951 = vpop.f32.mrf.mxu0
          %v952 = vadd.f32 %v903, %v951
          %953 = vmatmul.bf16.gmra.mxu0 %v478
          %v954 = vpop.f32.mrf.mxu0
          %v955 = vadd.f32 %v906, %v954
          %v956 = vpop.f32.mrf.mxu0
          %v957 = vadd.f32 %v908, %v956
          %958 = vmatmul.bf16.gmra.mxu0 %v482
          %v959 = vpop.f32.mrf.mxu0
          %v960 = vadd.f32 %v911, %v959
          %v961 = vpop.f32.mrf.mxu0
          %v962 = vadd.f32 %v913, %v961
          %963 = vmatmul.bf16.gmra.mxu0 %v486
          %v964 = vpop.f32.mrf.mxu0
          %v965 = vadd.f32 %v916, %v964
          %v966 = vpop.f32.mrf.mxu0
          %v967 = vadd.f32 %v918, %v966
          %968 = vmatmul.bf16.gmra.mxu0 %v490
          %v969 = vpop.f32.mrf.mxu0
          %v970 = vadd.f32 %v921, %v969
          %v971 = vpop.f32.mrf.mxu0
          %v972 = vadd.f32 %v923, %v971
          %973 = vmatmul.bf16.gmra.mxu0 %v494
          %v974 = vpop.f32.mrf.mxu0
          %v975 = vadd.f32 %v926, %v974
          %v976 = vpop.f32.mrf.mxu0
          %v977 = vadd.f32 %v928, %v976
          %978 = vdwg.mxu0
          %979 = vmatpush.bf16.msra.mxu0 %v799
          %980 = vmatpush.bf16.msra.mxu0 %v797
          %981 = vmatpush.bf16.msra.mxu0 %v795
          %982 = vmatpush.bf16.msra.mxu0 %v793
          %983 = vmatpush.bf16.msra.mxu0 %v791
          %984 = vmatpush.bf16.msra.mxu0 %v789
          %985 = vmatpush.bf16.msra.mxu0 %v787
          %986 = vmatpush.bf16.msra.mxu0 %v785
          %987 = vmatmul.bf16.gmra.mxu0 %v467
          %v988 = vpop.f32.mrf.mxu0
          %v989 = vadd.f32 %v940, %v988
          %v990 = vpop.f32.mrf.mxu0
          %v991 = vadd.f32 %v942, %v990
          %992 = vmatmul.bf16.gmra.mxu0 %v471
          %v993 = vpop.f32.mrf.mxu0
          %v994 = vadd.f32 %v945, %v993
          %v995 = vpop.f32.mrf.mxu0
          %v996 = vadd.f32 %v947, %v995
          %997 = vmatmul.bf16.gmra.mxu0 %v475
          %v998 = vpop.f32.mrf.mxu0
          %v999 = vadd.f32 %v950, %v998
          %v1000 = vpop.f32.mrf.mxu0
          %v1001 = vadd.f32 %v952, %v1000
          %1002 = vmatmul.bf16.gmra.mxu0 %v479
          %v1003 = vpop.f32.mrf.mxu0
          %v1004 = vadd.f32 %v955, %v1003
          %v1005 = vpop.f32.mrf.mxu0
          %v1006 = vadd.f32 %v957, %v1005
          %1007 = vmatmul.bf16.gmra.mxu0 %v483
          %v1008 = vpop.f32.mrf.mxu0
          %v1009 = vadd.f32 %v960, %v1008
          %v1010 = vpop.f32.mrf.mxu0
          %v1011 = vadd.f32 %v962, %v1010
          %1012 = vmatmul.bf16.gmra.mxu0 %v487
          %v1013 = vpop.f32.mrf.mxu0
          %v1014 = vadd.f32 %v965, %v1013
          %v1015 = vpop.f32.mrf.mxu0
          %v1016 = vadd.f32 %v967, %v1015
          %1017 = vmatmul.bf16.gmra.mxu0 %v491
          %v1018 = vpop.f32.mrf.mxu0
          %v1019 = vadd.f32 %v970, %v1018
          %v1020 = vpop.f32.mrf.mxu0
          %v1021 = vadd.f32 %v972, %v1020
          %1022 = vmatmul.bf16.gmra.mxu0 %v495
          %v1023 = vpop.f32.mrf.mxu0
          %v1024 = vadd.f32 %v975, %v1023
          %v1025 = vpop.f32.mrf.mxu0
          %v1026 = vadd.f32 %v977, %v1025
          %1027 = vdwg.mxu0
          %1028 = vmatpush.bf16.msra.mxu0 %v815
          %1029 = vmatpush.bf16.msra.mxu0 %v813
          %1030 = vmatpush.bf16.msra.mxu0 %v811
          %1031 = vmatpush.bf16.msra.mxu0 %v809
          %1032 = vmatpush.bf16.msra.mxu0 %v807
          %1033 = vmatpush.bf16.msra.mxu0 %v805
          %1034 = vmatpush.bf16.msra.mxu0 %v803
          %1035 = vmatpush.bf16.msra.mxu0 %v801
          %1036 = vmatmul.bf16.gmra.mxu0 %v468
          %v1037 = vpop.f32.mrf.mxu0
          %v1038 = vadd.f32 %v989, %v1037
          %v1039 = vpop.f32.mrf.mxu0
          %v1040 = vadd.f32 %v991, %v1039
          %1041 = vmatmul.bf16.gmra.mxu0 %v472
          %v1042 = vpop.f32.mrf.mxu0
          %v1043 = vadd.f32 %v994, %v1042
          %v1044 = vpop.f32.mrf.mxu0
          %v1045 = vadd.f32 %v996, %v1044
          %1046 = vmatmul.bf16.gmra.mxu0 %v476
          %v1047 = vpop.f32.mrf.mxu0
          %v1048 = vadd.f32 %v999, %v1047
          %v1049 = vpop.f32.mrf.mxu0
          %v1050 = vadd.f32 %v1001, %v1049
          %1051 = vmatmul.bf16.gmra.mxu0 %v480
          %v1052 = vpop.f32.mrf.mxu0
          %v1053 = vadd.f32 %v1004, %v1052
          %v1054 = vpop.f32.mrf.mxu0
          %v1055 = vadd.f32 %v1006, %v1054
          %1056 = vmatmul.bf16.gmra.mxu0 %v484
          %v1057 = vpop.f32.mrf.mxu0
          %v1058 = vadd.f32 %v1009, %v1057
          %v1059 = vpop.f32.mrf.mxu0
          %v1060 = vadd.f32 %v1011, %v1059
          %1061 = vmatmul.bf16.gmra.mxu0 %v488
          %v1062 = vpop.f32.mrf.mxu0
          %v1063 = vadd.f32 %v1014, %v1062
          %v1064 = vpop.f32.mrf.mxu0
          %v1065 = vadd.f32 %v1016, %v1064
          %1066 = vmatmul.bf16.gmra.mxu0 %v492
          %v1067 = vpop.f32.mrf.mxu0
          %v1068 = vadd.f32 %v1019, %v1067
          %v1069 = vpop.f32.mrf.mxu0
          %v1070 = vadd.f32 %v1021, %v1069
          %1071 = vmatmul.bf16.gmra.mxu0 %v496
          %v1072 = vpop.f32.mrf.mxu0
          %v1073 = vadd.f32 %v1024, %v1072
          %v1074 = vpop.f32.mrf.mxu0
          %v1075 = vadd.f32 %v1026, %v1074
          %1076 = vdwg.mxu0
          %1077 = vmatpush.bf16.msra.mxu0 %v768
          %1078 = vmatpush.bf16.msra.mxu0 %v766
          %1079 = vmatpush.bf16.msra.mxu0 %v764
          %1080 = vmatpush.bf16.msra.mxu0 %v762
          %1081 = vmatpush.bf16.msra.mxu0 %v760
          %1082 = vmatpush.bf16.msra.mxu0 %v758
          %1083 = vmatpush.bf16.msra.mxu0 %v756
          %1084 = vmatpush.bf16.msra.mxu0 %v754
          %1085 = vmatmul.bf16.gmra.mxu0 %v465
          %v1086 = vpop.f32.mrf.mxu0
          %v1087 = vadd.f32 0.0, %v1086
          %v1088 = vpop.f32.mrf.mxu0
          %v1089 = vadd.f32 0.0, %v1088
          %1090 = vmatmul.bf16.gmra.mxu0 %v469
          %v1091 = vpop.f32.mrf.mxu0
          %v1092 = vadd.f32 0.0, %v1091
          %v1093 = vpop.f32.mrf.mxu0
          %v1094 = vadd.f32 0.0, %v1093
          %1095 = vmatmul.bf16.gmra.mxu0 %v473
          %v1096 = vpop.f32.mrf.mxu0
          %v1097 = vadd.f32 0.0, %v1096
          %v1098 = vpop.f32.mrf.mxu0
          %v1099 = vadd.f32 0.0, %v1098
          %1100 = vmatmul.bf16.gmra.mxu0 %v477
          %v1101 = vpop.f32.mrf.mxu0
          %v1102 = vadd.f32 0.0, %v1101
          %v1103 = vpop.f32.mrf.mxu0
          %v1104 = vadd.f32 0.0, %v1103
          %1105 = vmatmul.bf16.gmra.mxu0 %v481
          %v1106 = vpop.f32.mrf.mxu0
          %v1107 = vadd.f32 0.0, %v1106
          %v1108 = vpop.f32.mrf.mxu0
          %v1109 = vadd.f32 0.0, %v1108
          %1110 = vmatmul.bf16.gmra.mxu0 %v485
          %v1111 = vpop.f32.mrf.mxu0
          %v1112 = vadd.f32 0.0, %v1111
          %v1113 = vpop.f32.mrf.mxu0
          %v1114 = vadd.f32 0.0, %v1113
          %1115 = vmatmul.bf16.gmra.mxu0 %v489
          %v1116 = vpop.f32.mrf.mxu0
          %v1117 = vadd.f32 0.0, %v1116
          %v1118 = vpop.f32.mrf.mxu0
          %v1119 = vadd.f32 0.0, %v1118
          %1120 = vmatmul.bf16.gmra.mxu0 %v493
          %v1121 = vpop.f32.mrf.mxu0
          %v1122 = vadd.f32 0.0, %v1121
          %v1123 = vpop.f32.mrf.mxu0
          %v1124 = vadd.f32 0.0, %v1123
          %1125 = vdwg.mxu0
          %1126 = vmatpush.bf16.msra.mxu0 %v784
          %1127 = vmatpush.bf16.msra.mxu0 %v782
          %1128 = vmatpush.bf16.msra.mxu0 %v780
          %1129 = vmatpush.bf16.msra.mxu0 %v778
          %1130 = vmatpush.bf16.msra.mxu0 %v776
          %1131 = vmatpush.bf16.msra.mxu0 %v774
          %1132 = vmatpush.bf16.msra.mxu0 %v772
          %1133 = vmatpush.bf16.msra.mxu0 %v770
          %1134 = vmatmul.bf16.gmra.mxu0 %v466
          %v1135 = vpop.f32.mrf.mxu0
          %v1136 = vadd.f32 %v1087, %v1135
          %v1137 = vpop.f32.mrf.mxu0
          %v1138 = vadd.f32 %v1089, %v1137
          %1139 = vmatmul.bf16.gmra.mxu0 %v470
          %v1140 = vpop.f32.mrf.mxu0
          %v1141 = vadd.f32 %v1092, %v1140
          %v1142 = vpop.f32.mrf.mxu0
          %v1143 = vadd.f32 %v1094, %v1142
          %1144 = vmatmul.bf16.gmra.mxu0 %v474
          %v1145 = vpop.f32.mrf.mxu0
          %v1146 = vadd.f32 %v1097, %v1145
          %v1147 = vpop.f32.mrf.mxu0
          %v1148 = vadd.f32 %v1099, %v1147
          %1149 = vmatmul.bf16.gmra.mxu0 %v478
          %v1150 = vpop.f32.mrf.mxu0
          %v1151 = vadd.f32 %v1102, %v1150
          %v1152 = vpop.f32.mrf.mxu0
          %v1153 = vadd.f32 %v1104, %v1152
          %1154 = vmatmul.bf16.gmra.mxu0 %v482
          %v1155 = vpop.f32.mrf.mxu0
          %v1156 = vadd.f32 %v1107, %v1155
          %v1157 = vpop.f32.mrf.mxu0
          %v1158 = vadd.f32 %v1109, %v1157
          %1159 = vmatmul.bf16.gmra.mxu0 %v486
          %v1160 = vpop.f32.mrf.mxu0
          %v1161 = vadd.f32 %v1112, %v1160
          %v1162 = vpop.f32.mrf.mxu0
          %v1163 = vadd.f32 %v1114, %v1162
          %1164 = vmatmul.bf16.gmra.mxu0 %v490
          %v1165 = vpop.f32.mrf.mxu0
          %v1166 = vadd.f32 %v1117, %v1165
          %v1167 = vpop.f32.mrf.mxu0
          %v1168 = vadd.f32 %v1119, %v1167
          %1169 = vmatmul.bf16.gmra.mxu0 %v494
          %v1170 = vpop.f32.mrf.mxu0
          %v1171 = vadd.f32 %v1122, %v1170
          %v1172 = vpop.f32.mrf.mxu0
          %v1173 = vadd.f32 %v1124, %v1172
          %1174 = vdwg.mxu0
          %1175 = vmatpush.bf16.msra.mxu0 %v800
          %1176 = vmatpush.bf16.msra.mxu0 %v798
          %1177 = vmatpush.bf16.msra.mxu0 %v796
          %1178 = vmatpush.bf16.msra.mxu0 %v794
          %1179 = vmatpush.bf16.msra.mxu0 %v792
          %1180 = vmatpush.bf16.msra.mxu0 %v790
          %1181 = vmatpush.bf16.msra.mxu0 %v788
          %1182 = vmatpush.bf16.msra.mxu0 %v786
          %1183 = vmatmul.bf16.gmra.mxu0 %v467
          %v1184 = vpop.f32.mrf.mxu0
          %v1185 = vadd.f32 %v1136, %v1184
          %v1186 = vpop.f32.mrf.mxu0
          %v1187 = vadd.f32 %v1138, %v1186
          %1188 = vmatmul.bf16.gmra.mxu0 %v471
          %v1189 = vpop.f32.mrf.mxu0
          %v1190 = vadd.f32 %v1141, %v1189
          %v1191 = vpop.f32.mrf.mxu0
          %v1192 = vadd.f32 %v1143, %v1191
          %1193 = vmatmul.bf16.gmra.mxu0 %v475
          %v1194 = vpop.f32.mrf.mxu0
          %v1195 = vadd.f32 %v1146, %v1194
          %v1196 = vpop.f32.mrf.mxu0
          %v1197 = vadd.f32 %v1148, %v1196
          %1198 = vmatmul.bf16.gmra.mxu0 %v479
          %v1199 = vpop.f32.mrf.mxu0
          %v1200 = vadd.f32 %v1151, %v1199
          %v1201 = vpop.f32.mrf.mxu0
          %v1202 = vadd.f32 %v1153, %v1201
          %1203 = vmatmul.bf16.gmra.mxu0 %v483
          %v1204 = vpop.f32.mrf.mxu0
          %v1205 = vadd.f32 %v1156, %v1204
          %v1206 = vpop.f32.mrf.mxu0
          %v1207 = vadd.f32 %v1158, %v1206
          %1208 = vmatmul.bf16.gmra.mxu0 %v487
          %v1209 = vpop.f32.mrf.mxu0
          %v1210 = vadd.f32 %v1161, %v1209
          %v1211 = vpop.f32.mrf.mxu0
          %v1212 = vadd.f32 %v1163, %v1211
          %1213 = vmatmul.bf16.gmra.mxu0 %v491
          %v1214 = vpop.f32.mrf.mxu0
          %v1215 = vadd.f32 %v1166, %v1214
          %v1216 = vpop.f32.mrf.mxu0
          %v1217 = vadd.f32 %v1168, %v1216
          %1218 = vmatmul.bf16.gmra.mxu0 %v495
          %v1219 = vpop.f32.mrf.mxu0
          %v1220 = vadd.f32 %v1171, %v1219
          %v1221 = vpop.f32.mrf.mxu0
          %v1222 = vadd.f32 %v1173, %v1221
          %1223 = vdwg.mxu0
          %1224 = vmatpush.bf16.msra.mxu0 %v816
          %1225 = vmatpush.bf16.msra.mxu0 %v814
          %1226 = vmatpush.bf16.msra.mxu0 %v812
          %1227 = vmatpush.bf16.msra.mxu0 %v810
          %1228 = vmatpush.bf16.msra.mxu0 %v808
          %1229 = vmatpush.bf16.msra.mxu0 %v806
          %1230 = vmatpush.bf16.msra.mxu0 %v804
          %1231 = vmatpush.bf16.msra.mxu0 %v802
          %1232 = vmatmul.bf16.gmra.mxu0 %v468
          %v1233 = vpop.f32.mrf.mxu0
          %v1234 = vadd.f32 %v1185, %v1233
          %v1235 = vpop.f32.mrf.mxu0
          %v1236 = vadd.f32 %v1187, %v1235
          %1237 = vmatmul.bf16.gmra.mxu0 %v472
          %v1238 = vpop.f32.mrf.mxu0
          %v1239 = vadd.f32 %v1190, %v1238
          %v1240 = vpop.f32.mrf.mxu0
          %v1241 = vadd.f32 %v1192, %v1240
          %1242 = vmatmul.bf16.gmra.mxu0 %v476
          %v1243 = vpop.f32.mrf.mxu0
          %v1244 = vadd.f32 %v1195, %v1243
          %v1245 = vpop.f32.mrf.mxu0
          %v1246 = vadd.f32 %v1197, %v1245
          %1247 = vmatmul.bf16.gmra.mxu0 %v480
          %v1248 = vpop.f32.mrf.mxu0
          %v1249 = vadd.f32 %v1200, %v1248
          %v1250 = vpop.f32.mrf.mxu0
          %v1251 = vadd.f32 %v1202, %v1250
          %1252 = vmatmul.bf16.gmra.mxu0 %v484
          %v1253 = vpop.f32.mrf.mxu0
          %v1254 = vadd.f32 %v1205, %v1253
          %v1255 = vpop.f32.mrf.mxu0
          %v1256 = vadd.f32 %v1207, %v1255
          %1257 = vmatmul.bf16.gmra.mxu0 %v488
          %v1258 = vpop.f32.mrf.mxu0
          %v1259 = vadd.f32 %v1210, %v1258
          %v1260 = vpop.f32.mrf.mxu0
          %v1261 = vadd.f32 %v1212, %v1260
          %1262 = vmatmul.bf16.gmra.mxu0 %v492
          %v1263 = vpop.f32.mrf.mxu0
          %v1264 = vadd.f32 %v1215, %v1263
          %v1265 = vpop.f32.mrf.mxu0
          %v1266 = vadd.f32 %v1217, %v1265
          %1267 = vmatmul.bf16.gmra.mxu0 %v496
          %v1268 = vpop.f32.mrf.mxu0
          %v1269 = vadd.f32 %v1220, %v1268
          %v1270 = vpop.f32.mrf.mxu0
          %v1271 = vadd.f32 %v1222, %v1270
          %1272 = vdwg.mxu0
          %s1273 = sshra.s32 %s390, 3
          %s1274 = sand.u32 %s390, 7
          %s1275 = smul.u32 %s1273, 2
          %s1276 = smul.addr %s1275, 8
          %s1277 = scalar_lea.vmem [#allocation2], %s1276
          %1278 = vst [vmem:[%s1277] sm:$0xff] %v1038
          %1279 = vst [vmem:[%s1277 + $0x8] sm:$0xff] %v1234
          %1280 = vst [vmem:[%s1277 + $0x10] sm:$0xff] %v1040
          %1281 = vst [vmem:[%s1277 + $0x18] sm:$0xff] %v1236
          %1282 = vst [vmem:[%s1277 + $0x20] sm:$0xff] %v1043
          %1283 = vst [vmem:[%s1277 + $0x28] sm:$0xff] %v1239
          %1284 = vst [vmem:[%s1277 + $0x30] sm:$0xff] %v1045
          %1285 = vst [vmem:[%s1277 + $0x38] sm:$0xff] %v1241
          %1286 = vst [vmem:[%s1277 + $0x40] sm:$0xff] %v1048
          %1287 = vst [vmem:[%s1277 + $0x48] sm:$0xff] %v1244
          %1288 = vst [vmem:[%s1277 + $0x50] sm:$0xff] %v1050
          %1289 = vst [vmem:[%s1277 + $0x58] sm:$0xff] %v1246
          %1290 = vst [vmem:[%s1277 + $0x60] sm:$0xff] %v1053
          %1291 = vst [vmem:[%s1277 + $0x68] sm:$0xff] %v1249
          %1292 = vst [vmem:[%s1277 + $0x70] sm:$0xff] %v1055
          %1293 = vst [vmem:[%s1277 + $0x78] sm:$0xff] %v1251
          %1294 = vst [vmem:[%s1277 + $0x80] sm:$0xff] %v1058
          %1295 = vst [vmem:[%s1277 + $0x88] sm:$0xff] %v1254
          %1296 = vst [vmem:[%s1277 + $0x90] sm:$0xff] %v1060
          %1297 = vst [vmem:[%s1277 + $0x98] sm:$0xff] %v1256
          %1298 = vst [vmem:[%s1277 + $0xa0] sm:$0xff] %v1063
          %1299 = vst [vmem:[%s1277 + $0xa8] sm:$0xff] %v1259
          %1300 = vst [vmem:[%s1277 + $0xb0] sm:$0xff] %v1065
          %1301 = vst [vmem:[%s1277 + $0xb8] sm:$0xff] %v1261
          %1302 = vst [vmem:[%s1277 + $0xc0] sm:$0xff] %v1068
          %1303 = vst [vmem:[%s1277 + $0xc8] sm:$0xff] %v1264
          %1304 = vst [vmem:[%s1277 + $0xd0] sm:$0xff] %v1070
          %1305 = vst [vmem:[%s1277 + $0xd8] sm:$0xff] %v1266
          %1306 = vst [vmem:[%s1277 + $0xe0] sm:$0xff] %v1073
          %1307 = vst [vmem:[%s1277 + $0xe8] sm:$0xff] %v1269
          %1308 = vst [vmem:[%s1277 + $0xf0] sm:$0xff] %v1075
          %1309 = vst [vmem:[%s1277 + $0xf8] sm:$0xff] %v1271
          %v1310 = vld [vmem:[#allocation4] sm:$0xf]
          %v1311 = vadd.f32 %v1038, %v1040
          %v1312 = vadd.f32 %v1311, %v1043
          %v1313 = vadd.f32 %v1312, %v1045
          %v1314 = vadd.f32 %v1313, %v1048
          %v1315 = vadd.f32 %v1314, %v1050
          %v1316 = vadd.f32 %v1315, %v1053
          %v1317 = vadd.f32 %v1316, %v1055
          %v1318 = vadd.f32 %v1317, %v1058
          %v1319 = vadd.f32 %v1318, %v1060
          %v1320 = vadd.f32 %v1319, %v1063
          %v1321 = vadd.f32 %v1320, %v1065
          %v1322 = vadd.f32 %v1321, %v1068
          %v1323 = vadd.f32 %v1322, %v1070
          %v1324 = vadd.f32 %v1323, %v1073
          %v1325 = vadd.f32 %v1324, %v1075
          %v1326 = vrot.slane %v1325, 4
          %v1327 = vadd.f32 %v1325, %v1326
          %v1328 = vrot.slane %v1327, 2
          %v1329 = vadd.f32 %v1327, %v1328
          %v1330 = vrot.slane %v1329, 1
          %v1331 = vadd.f32 %v1329, %v1330
          %v1332 = vadd.f32 %v1234, %v1236
          %v1333 = vadd.f32 %v1332, %v1239
          %v1334 = vadd.f32 %v1333, %v1241
          %v1335 = vadd.f32 %v1334, %v1244
          %v1336 = vadd.f32 %v1335, %v1246
          %v1337 = vadd.f32 %v1336, %v1249
          %v1338 = vadd.f32 %v1337, %v1251
          %v1339 = vadd.f32 %v1338, %v1254
          %v1340 = vadd.f32 %v1339, %v1256
          %v1341 = vadd.f32 %v1340, %v1259
          %v1342 = vadd.f32 %v1341, %v1261
          %v1343 = vadd.f32 %v1342, %v1264
          %v1344 = vadd.f32 %v1343, %v1266
          %v1345 = vadd.f32 %v1344, %v1269
          %v1346 = vadd.f32 %v1345, %v1271
          %v1347 = vrot.slane %v1346, 4
          %v1348 = vadd.f32 %v1346, %v1347
          %v1349 = vrot.slane %v1348, 2
          %v1350 = vadd.f32 %v1348, %v1349
          %v1351 = vrot.slane %v1350, 1
          %v1352 = vadd.f32 %v1350, %v1351
          %v1353 = vmul.f32 %v1038, %v1038
          %v1354 = vmul.f32 %v1234, %v1234
          %v1355 = vmul.f32 %v1040, %v1040
          %v1356 = vmul.f32 %v1236, %v1236
          %v1357 = vmul.f32 %v1043, %v1043
          %v1358 = vmul.f32 %v1239, %v1239
          %v1359 = vmul.f32 %v1045, %v1045
          %v1360 = vmul.f32 %v1241, %v1241
          %v1361 = vmul.f32 %v1048, %v1048
          %v1362 = vmul.f32 %v1244, %v1244
          %v1363 = vmul.f32 %v1050, %v1050
          %v1364 = vmul.f32 %v1246, %v1246
          %v1365 = vmul.f32 %v1053, %v1053
          %v1366 = vmul.f32 %v1249, %v1249
          %v1367 = vmul.f32 %v1055, %v1055
          %v1368 = vmul.f32 %v1251, %v1251
          %v1369 = vmul.f32 %v1058, %v1058
          %v1370 = vmul.f32 %v1254, %v1254
          %v1371 = vmul.f32 %v1060, %v1060
          %v1372 = vmul.f32 %v1256, %v1256
          %v1373 = vmul.f32 %v1063, %v1063
          %v1374 = vmul.f32 %v1259, %v1259
          %v1375 = vmul.f32 %v1065, %v1065
          %v1376 = vmul.f32 %v1261, %v1261
          %v1377 = vmul.f32 %v1068, %v1068
          %v1378 = vmul.f32 %v1264, %v1264
          %v1379 = vmul.f32 %v1070, %v1070
          %v1380 = vmul.f32 %v1266, %v1266
          %v1381 = vmul.f32 %v1073, %v1073
          %v1382 = vmul.f32 %v1269, %v1269
          %v1383 = vmul.f32 %v1075, %v1075
          %v1384 = vmul.f32 %v1271, %v1271
          %v1385 = vadd.f32 %v1353, %v1355
          %v1386 = vadd.f32 %v1385, %v1357
          %v1387 = vadd.f32 %v1386, %v1359
          %v1388 = vadd.f32 %v1387, %v1361
          %v1389 = vadd.f32 %v1388, %v1363
          %v1390 = vadd.f32 %v1389, %v1365
          %v1391 = vadd.f32 %v1390, %v1367
          %v1392 = vadd.f32 %v1391, %v1369
          %v1393 = vadd.f32 %v1392, %v1371
          %v1394 = vadd.f32 %v1393, %v1373
          %v1395 = vadd.f32 %v1394, %v1375
          %v1396 = vadd.f32 %v1395, %v1377
          %v1397 = vadd.f32 %v1396, %v1379
          %v1398 = vadd.f32 %v1397, %v1381
          %v1399 = vadd.f32 %v1398, %v1383
          %v1400 = vrot.slane %v1399, 4
          %v1401 = vadd.f32 %v1399, %v1400
          %v1402 = vrot.slane %v1401, 2
          %v1403 = vadd.f32 %v1401, %v1402
          %v1404 = vrot.slane %v1403, 1
          %v1405 = vadd.f32 %v1403, %v1404
          %v1406 = vadd.f32 %v1354, %v1356
          %v1407 = vadd.f32 %v1406, %v1358
          %v1408 = vadd.f32 %v1407, %v1360
          %v1409 = vadd.f32 %v1408, %v1362
          %v1410 = vadd.f32 %v1409, %v1364
          %v1411 = vadd.f32 %v1410, %v1366
          %v1412 = vadd.f32 %v1411, %v1368
          %v1413 = vadd.f32 %v1412, %v1370
          %v1414 = vadd.f32 %v1413, %v1372
          %v1415 = vadd.f32 %v1414, %v1374
          %v1416 = vadd.f32 %v1415, %v1376
          %v1417 = vadd.f32 %v1416, %v1378
          %v1418 = vadd.f32 %v1417, %v1380
          %v1419 = vadd.f32 %v1418, %v1382
          %v1420 = vadd.f32 %v1419, %v1384
          %v1421 = vrot.slane %v1420, 4
          %v1422 = vadd.f32 %v1420, %v1421
          %v1423 = vrot.slane %v1422, 2
          %v1424 = vadd.f32 %v1422, %v1423
          %v1425 = vrot.slane %v1424, 1
          %v1426 = vadd.f32 %v1424, %v1425
          %vm1427 = vcmask 1040384
          %v1428 = vsel %vm1427, %v1331, %v1405
          %v1429 = vsel %vm1427, %v1352, %v1426
          %v1432 = vrot.slane %v1429, 6
          %vm1433 = vcmask 1041408
          %v1434 = vsel %vm1433, %v1428, %v1432
          %v1436 = vadd.f32 %v1310, %v1434
          %1437 = vst [vmem:[#allocation4] sm:$0xf] %v1436
        $region72: #{projection_head.1} parent=47 // pred_fallthru
          _
        %p1438 = scmp.eq.s32.totalorder %s30, 1
        // Predicated region
        $region77: #{projection_head.1} parent=47 // pred_check
          %p1439 = pneg %p1438
        $region78: #{projection_head.1} parent=47 // pred_check_branch
          %1441 = sbr.rel (%p1439) target = $region80
        $region79: #{projection_head.1} parent=47 // pred_region
          %p1442 = scmp.eq.s32.totalorder %s31, 0
          // Predicated region
          $region81: #{projection_head.1} parent=79 // pred_check
            %p1443 = pneg %p1442
          $region82: #{projection_head.1} parent=79 // pred_check_branch
            %1445 = sbr.rel (%p1443) target = $region84
          $region83: #{projection_head.1} parent=79 // pred_region
            %v1446 = vld [vmem:[#allocation4] ss:$2 sm:$0x3]
            %v1447 = vrcp.pop 256.0
            %v1448 = vmul.f32 256.0, %v1447
            %v1449 = vsub.f32 1.0, %v1448
            %v1450 = vmul.f32 %v1447, %v1449
            %v1451 = vadd.f32 %v1447, %v1450
            %vm1452 = vweird.f32 %v1447
            %v1453 = vsel %vm1452, %v1447, %v1451
            %v1454 = vmul.f32 %v1446, %v1453
            %s1455 = scalar_lea.vmem [#allocation4], 1
            %v1456 = vld [vmem:[%s1455] ss:$2 sm:$0x3]
            %v1457 = vmul.f32 %v1456, %v1453
            %v1458 = vmul.f32 %v1454, %v1454
            %v1459 = vsub.f32 %v1457, %v1458
            %v1460 = vmax.f32 %v1459, 0.0
            %v1461 = vld [vmem:[%s3] sm:$0x3]
            %v1462 = vadd.f32 %v1460, 1e-05
            %v1463 = vrsqrt.pop %v1462
            %v1464 = vmul.f32 %v1463, %v1462
            %v1465 = vmul.f32 %v1464, %v1463
            %v1466 = vmul.f32 0.5, %v1465
            %v1467 = vsub.f32 1.5, %v1466
            %v1468 = vmul.f32 %v1463, %v1467
            %vm1469 = vweird.f32 %v1462
            %vm1470 = vweird.f32 %v1463
            %vm1471 = vmor %vm1469, %vm1470
            %v1472 = vsel %vm1471, %v1463, %v1468
            %v1473 = vmul.f32 %v1461, %v1472
            %v1474 = vld [vmem:[#allocation12] sm:$0x3]
            %v1475 = vmul.f32 %v1454, %v1473
            %v1476 = vsub.f32 %v1474, %v1475
            %v1478 = vperm.slane %v1473, 0
            %v1479 = vperm.slane %v1473, 1
            %v1483 = vperm.slane %v1476, 0
            %v1484 = vperm.slane %v1476, 1
            %vm1487 = vcmask 1040384
            %v1488 = vsel %vm1487, %v1478, %v1483
            %v1489 = vsel %vm1487, %v1479, %v1484
            %v1492 = vrot.slane %v1489, 6
            %vm1493 = vcmask 1041408
            %v1494 = vsel %vm1493, %v1488, %v1492
            %1496 = vst [vmem:[#allocation4] sm:$0xf] %v1494
          $region84: #{projection_head.1} parent=79 // pred_fallthru
            _
          %s1497 = sshra.s32 %s390, 3
          %s1498 = sand.u32 %s390, 7
          %s1499 = smul.u32 %s1497, 2
          %s1500 = smul.addr %s1499, 8
          %s1501 = scalar_lea.vmem [#allocation2], %s1500
          %v1502 = vld [vmem:[%s1501] sm:$0xff]
          %v1503 = vld [vmem:[%s1501 + $0x8] sm:$0xff]
          %v1504 = vld [vmem:[%s1501 + $0x10] sm:$0xff]
          %v1505 = vld [vmem:[%s1501 + $0x18] sm:$0xff]
          %v1506 = vld [vmem:[%s1501 + $0x20] sm:$0xff]
          %v1507 = vld [vmem:[%s1501 + $0x28] sm:$0xff]
          %v1508 = vld [vmem:[%s1501 + $0x30] sm:$0xff]
          %v1509 = vld [vmem:[%s1501 + $0x38] sm:$0xff]
          %v1510 = vld [vmem:[%s1501 + $0x40] sm:$0xff]
          %v1511 = vld [vmem:[%s1501 + $0x48] sm:$0xff]
          %v1512 = vld [vmem:[%s1501 + $0x50] sm:$0xff]
          %v1513 = vld [vmem:[%s1501 + $0x58] sm:$0xff]
          %v1514 = vld [vmem:[%s1501 + $0x60] sm:$0xff]
          %v1515 = vld [vmem:[%s1501 + $0x68] sm:$0xff]
          %v1516 = vld [vmem:[%s1501 + $0x70] sm:$0xff]
          %v1517 = vld [vmem:[%s1501 + $0x78] sm:$0xff]
          %v1518 = vld [vmem:[%s1501 + $0x80] sm:$0xff]
          %v1519 = vld [vmem:[%s1501 + $0x88] sm:$0xff]
          %v1520 = vld [vmem:[%s1501 + $0x90] sm:$0xff]
          %v1521 = vld [vmem:[%s1501 + $0x98] sm:$0xff]
          %v1522 = vld [vmem:[%s1501 + $0xa0] sm:$0xff]
          %v1523 = vld [vmem:[%s1501 + $0xa8] sm:$0xff]
          %v1524 = vld [vmem:[%s1501 + $0xb0] sm:$0xff]
          %v1525 = vld [vmem:[%s1501 + $0xb8] sm:$0xff]
          %v1526 = vld [vmem:[%s1501 + $0xc0] sm:$0xff]
          %v1527 = vld [vmem:[%s1501 + $0xc8] sm:$0xff]
          %v1528 = vld [vmem:[%s1501 + $0xd0] sm:$0xff]
          %v1529 = vld [vmem:[%s1501 + $0xd8] sm:$0xff]
          %v1530 = vld [vmem:[%s1501 + $0xe0] sm:$0xff]
          %v1531 = vld [vmem:[%s1501 + $0xe8] sm:$0xff]
          %v1532 = vld [vmem:[%s1501 + $0xf0] sm:$0xff]
          %v1533 = vld [vmem:[%s1501 + $0xf8] sm:$0xff]
          %v1534 = vld [vmem:[#allocation4] ss:$2 sm:$0x3]
          %v1536 = vperm.slane %v1534, 0
          %v1537 = vperm.slane %v1534, 1
          %v1540 = vmul.f32 %v1502, %v1536
          %v1541 = vmul.f32 %v1503, %v1537
          %v1542 = vmul.f32 %v1504, %v1536
          %v1543 = vmul.f32 %v1505, %v1537
          %v1544 = vmul.f32 %v1506, %v1536
          %v1545 = vmul.f32 %v1507, %v1537
          %v1546 = vmul.f32 %v1508, %v1536
          %v1547 = vmul.f32 %v1509, %v1537
          %v1548 = vmul.f32 %v1510, %v1536
          %v1549 = vmul.f32 %v1511, %v1537
          %v1550 = vmul.f32 %v1512, %v1536
          %v1551 = vmul.f32 %v1513, %v1537
          %v1552 = vmul.f32 %v1514, %v1536
          %v1553 = vmul.f32 %v1515, %v1537
          %v1554 = vmul.f32 %v1516, %v1536
          %v1555 = vmul.f32 %v1517, %v1537
          %v1556 = vmul.f32 %v1518, %v1536
          %v1557 = vmul.f32 %v1519, %v1537
          %v1558 = vmul.f32 %v1520, %v1536
          %v1559 = vmul.f32 %v1521, %v1537
          %v1560 = vmul.f32 %v1522, %v1536
          %v1561 = vmul.f32 %v1523, %v1537
          %v1562 = vmul.f32 %v1524, %v1536
          %v1563 = vmul.f32 %v1525, %v1537
          %v1564 = vmul.f32 %v1526, %v1536
          %v1565 = vmul.f32 %v1527, %v1537
          %v1566 = vmul.f32 %v1528, %v1536
          %v1567 = vmul.f32 %v1529, %v1537
          %v1568 = vmul.f32 %v1530, %v1536
          %v1569 = vmul.f32 %v1531, %v1537
          %v1570 = vmul.f32 %v1532, %v1536
          %v1571 = vmul.f32 %v1533, %v1537
          %s1572 = scalar_lea.vmem [#allocation4], 1
          %v1573 = vld [vmem:[%s1572] ss:$2 sm:$0x3]
          %v1575 = vperm.slane %v1573, 0
          %v1576 = vperm.slane %v1573, 1
          %v1579 = vadd.f32 %v1540, %v1575
          %v1580 = vadd.f32 %v1541, %v1576
          %v1581 = vadd.f32 %v1542, %v1575
          %v1582 = vadd.f32 %v1543, %v1576
          %v1583 = vadd.f32 %v1544, %v1575
          %v1584 = vadd.f32 %v1545, %v1576
          %v1585 = vadd.f32 %v1546, %v1575
          %v1586 = vadd.f32 %v1547, %v1576
          %v1587 = vadd.f32 %v1548, %v1575
          %v1588 = vadd.f32 %v1549, %v1576
          %v1589 = vadd.f32 %v1550, %v1575
          %v1590 = vadd.f32 %v1551, %v1576
          %v1591 = vadd.f32 %v1552, %v1575
          %v1592 = vadd.f32 %v1553, %v1576
          %v1593 = vadd.f32 %v1554, %v1575
          %v1594 = vadd.f32 %v1555, %v1576
          %v1595 = vadd.f32 %v1556, %v1575
          %v1596 = vadd.f32 %v1557, %v1576
          %v1597 = vadd.f32 %v1558, %v1575
          %v1598 = vadd.f32 %v1559, %v1576
          %v1599 = vadd.f32 %v1560, %v1575
          %v1600 = vadd.f32 %v1561, %v1576
          %v1601 = vadd.f32 %v1562, %v1575
          %v1602 = vadd.f32 %v1563, %v1576
          %v1603 = vadd.f32 %v1564, %v1575
          %v1604 = vadd.f32 %v1565, %v1576
          %v1605 = vadd.f32 %v1566, %v1575
          %v1606 = vadd.f32 %v1567, %v1576
          %v1607 = vadd.f32 %v1568, %v1575
          %v1608 = vadd.f32 %v1569, %v1576
          %v1609 = vadd.f32 %v1570, %v1575
          %v1610 = vadd.f32 %v1571, %v1576
          %v1611 = vmax.f32 %v1579, 0.0
          %v1612 = vmax.f32 %v1580, 0.0
          %v1613 = vmax.f32 %v1581, 0.0
          %v1614 = vmax.f32 %v1582, 0.0
          %v1615 = vmax.f32 %v1583, 0.0
          %v1616 = vmax.f32 %v1584, 0.0
          %v1617 = vmax.f32 %v1585, 0.0
          %v1618 = vmax.f32 %v1586, 0.0
          %v1619 = vmax.f32 %v1587, 0.0
          %v1620 = vmax.f32 %v1588, 0.0
          %v1621 = vmax.f32 %v1589, 0.0
          %v1622 = vmax.f32 %v1590, 0.0
          %v1623 = vmax.f32 %v1591, 0.0
          %v1624 = vmax.f32 %v1592, 0.0
          %v1625 = vmax.f32 %v1593, 0.0
          %v1626 = vmax.f32 %v1594, 0.0
          %v1627 = vmax.f32 %v1595, 0.0
          %v1628 = vmax.f32 %v1596, 0.0
          %v1629 = vmax.f32 %v1597, 0.0
          %v1630 = vmax.f32 %v1598, 0.0
          %v1631 = vmax.f32 %v1599, 0.0
          %v1632 = vmax.f32 %v1600, 0.0
          %v1633 = vmax.f32 %v1601, 0.0
          %v1634 = vmax.f32 %v1602, 0.0
          %v1635 = vmax.f32 %v1603, 0.0
          %v1636 = vmax.f32 %v1604, 0.0
          %v1637 = vmax.f32 %v1605, 0.0
          %v1638 = vmax.f32 %v1606, 0.0
          %v1639 = vmax.f32 %v1607, 0.0
          %v1640 = vmax.f32 %v1608, 0.0
          %v1641 = vmax.f32 %v1609, 0.0
          %v1642 = vmax.f32 %v1610, 0.0
          %v1643 = vpack.c.bf16 %v1613, %v1611
          %v1644 = vpack.c.bf16 %v1614, %v1612
          %v1645 = vpack.c.bf16 %v1617, %v1615
          %v1646 = vpack.c.bf16 %v1618, %v1616
          %v1647 = vpack.c.bf16 %v1621, %v1619
          %v1648 = vpack.c.bf16 %v1622, %v1620
          %v1649 = vpack.c.bf16 %v1625, %v1623
          %v1650 = vpack.c.bf16 %v1626, %v1624
          %v1651 = vpack.c.bf16 %v1629, %v1627
          %v1652 = vpack.c.bf16 %v1630, %v1628
          %v1653 = vpack.c.bf16 %v1633, %v1631
          %v1654 = vpack.c.bf16 %v1634, %v1632
          %v1655 = vpack.c.bf16 %v1637, %v1635
          %v1656 = vpack.c.bf16 %v1638, %v1636
          %v1657 = vpack.c.bf16 %v1641, %v1639
          %v1658 = vpack.c.bf16 %v1642, %v1640
          %v1659 = vld [vmem:[#allocation11] sm:$0xf]
          %v1660 = vld [vmem:[#allocation11 + $0x4] sm:$0xf]
          %v1661 = vld [vmem:[#allocation11 + $0x8] sm:$0xf]
          %v1662 = vld [vmem:[#allocation11 + $0xc] sm:$0xf]
          %v1663 = vld [vmem:[#allocation11 + $0x10] sm:$0xf]
          %v1664 = vld [vmem:[#allocation11 + $0x14] sm:$0xf]
          %v1665 = vld [vmem:[#allocation11 + $0x18] sm:$0xf]
          %v1666 = vld [vmem:[#allocation11 + $0x1c] sm:$0xf]
          %v1667 = vld [vmem:[#allocation11 + $0x20] sm:$0xf]
          %v1668 = vld [vmem:[#allocation11 + $0x24] sm:$0xf]
          %v1669 = vld [vmem:[#allocation11 + $0x28] sm:$0xf]
          %v1670 = vld [vmem:[#allocation11 + $0x2c] sm:$0xf]
          %v1671 = vld [vmem:[#allocation11 + $0x30] sm:$0xf]
          %v1672 = vld [vmem:[#allocation11 + $0x34] sm:$0xf]
          %v1673 = vld [vmem:[#allocation11 + $0x38] sm:$0xf]
          %v1674 = vld [vmem:[#allocation11 + $0x3c] sm:$0xf]
          %v1675 = vld [vmem:[#allocation11 + $0x40] sm:$0xf]
          %v1676 = vld [vmem:[#allocation11 + $0x44] sm:$0xf]
          %v1677 = vld [vmem:[#allocation11 + $0x48] sm:$0xf]
          %v1678 = vld [vmem:[#allocation11 + $0x4c] sm:$0xf]
          %v1679 = vld [vmem:[#allocation11 + $0x50] sm:$0xf]
          %v1680 = vld [vmem:[#allocation11 + $0x54] sm:$0xf]
          %v1681 = vld [vmem:[#allocation11 + $0x58] sm:$0xf]
          %v1682 = vld [vmem:[#allocation11 + $0x5c] sm:$0xf]
          %v1683 = vld [vmem:[#allocation11 + $0x60] sm:$0xf]
          %v1684 = vld [vmem:[#allocation11 + $0x64] sm:$0xf]
          %v1685 = vld [vmem:[#allocation11 + $0x68] sm:$0xf]
          %v1686 = vld [vmem:[#allocation11 + $0x6c] sm:$0xf]
          %v1687 = vld [vmem:[#allocation11 + $0x70] sm:$0xf]
          %v1688 = vld [vmem:[#allocation11 + $0x74] sm:$0xf]
          %v1689 = vld [vmem:[#allocation11 + $0x78] sm:$0xf]
          %v1690 = vld [vmem:[#allocation11 + $0x7c] sm:$0xf]
          %v1723 = vunpack.c.l.b16 %v1659
          %v1724 = vunpack.c.l.b16 %v1660
          %v1725 = vunpack.c.l.b16 %v1661
          %v1726 = vunpack.c.l.b16 %v1662
          %v1727 = vunpack.c.l.b16 %v1663
          %v1728 = vunpack.c.l.b16 %v1664
          %v1729 = vunpack.c.l.b16 %v1665
          %v1730 = vunpack.c.l.b16 %v1666
          %v1731 = vunpack.c.l.b16 %v1667
          %v1732 = vunpack.c.l.b16 %v1668
          %v1733 = vunpack.c.l.b16 %v1669
          %v1734 = vunpack.c.l.b16 %v1670
          %v1735 = vunpack.c.l.b16 %v1671
          %v1736 = vunpack.c.l.b16 %v1672
          %v1737 = vunpack.c.l.b16 %v1673
          %v1738 = vunpack.c.l.b16 %v1674
          %v1739 = vunpack.c.l.b16 %v1675
          %v1740 = vunpack.c.l.b16 %v1676
          %v1741 = vunpack.c.l.b16 %v1677
          %v1742 = vunpack.c.l.b16 %v1678
          %v1743 = vunpack.c.l.b16 %v1679
          %v1744 = vunpack.c.l.b16 %v1680
          %v1745 = vunpack.c.l.b16 %v1681
          %v1746 = vunpack.c.l.b16 %v1682
          %v1747 = vunpack.c.l.b16 %v1683
          %v1748 = vunpack.c.l.b16 %v1684
          %v1749 = vunpack.c.l.b16 %v1685
          %v1750 = vunpack.c.l.b16 %v1686
          %v1751 = vunpack.c.l.b16 %v1687
          %v1752 = vunpack.c.l.b16 %v1688
          %v1753 = vunpack.c.l.b16 %v1689
          %v1754 = vunpack.c.l.b16 %v1690
          %v1755 = vpack.c.b16 %v1724, %v1723
          %v1756 = vpack.c.b16 %v1726, %v1725
          %v1757 = vpack.c.b16 %v1728, %v1727
          %v1758 = vpack.c.b16 %v1730, %v1729
          %v1759 = vpack.c.b16 %v1732, %v1731
          %v1760 = vpack.c.b16 %v1734, %v1733
          %v1761 = vpack.c.b16 %v1736, %v1735
          %v1762 = vpack.c.b16 %v1738, %v1737
          %v1763 = vpack.c.b16 %v1740, %v1739
          %v1764 = vpack.c.b16 %v1742, %v1741
          %v1765 = vpack.c.b16 %v1744, %v1743
          %v1766 = vpack.c.b16 %v1746, %v1745
          %v1767 = vpack.c.b16 %v1748, %v1747
          %v1768 = vpack.c.b16 %v1750, %v1749
          %v1769 = vpack.c.b16 %v1752, %v1751
          %v1770 = vpack.c.b16 %v1754, %v1753
          %1787 = vmatpush.bf16.msra.mxu0 %v1762
          %1788 = vmatpush.bf16.msra.mxu0 %v1761
          %1789 = vmatpush.bf16.msra.mxu0 %v1760
          %1790 = vmatpush.bf16.msra.mxu0 %v1759
          %1791 = vmatpush.bf16.msra.mxu0 %v1758
          %1792 = vmatpush.bf16.msra.mxu0 %v1757
          %1793 = vmatpush.bf16.msra.mxu0 %v1756
          %1794 = vmatpush.bf16.msra.mxu0 %v1755
          %1795 = vmatmul.bf16.gmra.mxu0 %v1643
          %v1796 = vpop.f32.mrf.mxu0
          %v1797 = vadd.f32 0.0, %v1796
          %v1798 = vpop.f32.mrf.mxu0
          %v1799 = vadd.f32 0.0, %v1798
          %1800 = vmatmul.bf16.gmra.mxu0 %v1645
          %v1801 = vpop.f32.mrf.mxu0
          %v1802 = vadd.f32 0.0, %v1801
          %v1803 = vpop.f32.mrf.mxu0
          %v1804 = vadd.f32 0.0, %v1803
          %1805 = vmatmul.bf16.gmra.mxu0 %v1647
          %v1806 = vpop.f32.mrf.mxu0
          %v1807 = vadd.f32 0.0, %v1806
          %v1808 = vpop.f32.mrf.mxu0
          %v1809 = vadd.f32 0.0, %v1808
          %1810 = vmatmul.bf16.gmra.mxu0 %v1649
          %v1811 = vpop.f32.mrf.mxu0
          %v1812 = vadd.f32 0.0, %v1811
          %v1813 = vpop.f32.mrf.mxu0
          %v1814 = vadd.f32 0.0, %v1813
          %1815 = vmatmul.bf16.gmra.mxu0 %v1651
          %v1816 = vpop.f32.mrf.mxu0
          %v1817 = vadd.f32 0.0, %v1816
          %v1818 = vpop.f32.mrf.mxu0
          %v1819 = vadd.f32 0.0, %v1818
          %1820 = vmatmul.bf16.gmra.mxu0 %v1653
          %v1821 = vpop.f32.mrf.mxu0
          %v1822 = vadd.f32 0.0, %v1821
          %v1823 = vpop.f32.mrf.mxu0
          %v1824 = vadd.f32 0.0, %v1823
          %1825 = vmatmul.bf16.gmra.mxu0 %v1655
          %v1826 = vpop.f32.mrf.mxu0
          %v1827 = vadd.f32 0.0, %v1826
          %v1828 = vpop.f32.mrf.mxu0
          %v1829 = vadd.f32 0.0, %v1828
          %1830 = vmatmul.bf16.gmra.mxu0 %v1657
          %v1831 = vpop.f32.mrf.mxu0
          %v1832 = vadd.f32 0.0, %v1831
          %v1833 = vpop.f32.mrf.mxu0
          %v1834 = vadd.f32 0.0, %v1833
          %1835 = vdwg.mxu0
          %1836 = vmatpush.bf16.msra.mxu0 %v1770
          %1837 = vmatpush.bf16.msra.mxu0 %v1769
          %1838 = vmatpush.bf16.msra.mxu0 %v1768
          %1839 = vmatpush.bf16.msra.mxu0 %v1767
          %1840 = vmatpush.bf16.msra.mxu0 %v1766
          %1841 = vmatpush.bf16.msra.mxu0 %v1765
          %1842 = vmatpush.bf16.msra.mxu0 %v1764
          %1843 = vmatpush.bf16.msra.mxu0 %v1763
          %1844 = vmatmul.bf16.gmra.mxu0 %v1644
          %v1845 = vpop.f32.mrf.mxu0
          %v1846 = vadd.f32 %v1797, %v1845
          %v1847 = vpop.f32.mrf.mxu0
          %v1848 = vadd.f32 %v1799, %v1847
          %1849 = vmatmul.bf16.gmra.mxu0 %v1646
          %v1850 = vpop.f32.mrf.mxu0
          %v1851 = vadd.f32 %v1802, %v1850
          %v1852 = vpop.f32.mrf.mxu0
          %v1853 = vadd.f32 %v1804, %v1852
          %1854 = vmatmul.bf16.gmra.mxu0 %v1648
          %v1855 = vpop.f32.mrf.mxu0
          %v1856 = vadd.f32 %v1807, %v1855
          %v1857 = vpop.f32.mrf.mxu0
          %v1858 = vadd.f32 %v1809, %v1857
          %1859 = vmatmul.bf16.gmra.mxu0 %v1650
          %v1860 = vpop.f32.mrf.mxu0
          %v1861 = vadd.f32 %v1812, %v1860
          %v1862 = vpop.f32.mrf.mxu0
          %v1863 = vadd.f32 %v1814, %v1862
          %1864 = vmatmul.bf16.gmra.mxu0 %v1652
          %v1865 = vpop.f32.mrf.mxu0
          %v1866 = vadd.f32 %v1817, %v1865
          %v1867 = vpop.f32.mrf.mxu0
          %v1868 = vadd.f32 %v1819, %v1867
          %1869 = vmatmul.bf16.gmra.mxu0 %v1654
          %v1870 = vpop.f32.mrf.mxu0
          %v1871 = vadd.f32 %v1822, %v1870
          %v1872 = vpop.f32.mrf.mxu0
          %v1873 = vadd.f32 %v1824, %v1872
          %1874 = vmatmul.bf16.gmra.mxu0 %v1656
          %v1875 = vpop.f32.mrf.mxu0
          %v1876 = vadd.f32 %v1827, %v1875
          %v1877 = vpop.f32.mrf.mxu0
          %v1878 = vadd.f32 %v1829, %v1877
          %1879 = vmatmul.bf16.gmra.mxu0 %v1658
          %v1880 = vpop.f32.mrf.mxu0
          %v1881 = vadd.f32 %v1832, %v1880
          %v1882 = vpop.f32.mrf.mxu0
          %v1883 = vadd.f32 %v1834, %v1882
          %1884 = vdwg.mxu0
          %s1885 = scalar_lea.vmem [#allocation3], %s390
          %1886 = vst [vmem:[%s1885] sm:$0xff] %v1846
          %1887 = vst [vmem:[%s1885 + $0x8] sm:$0xff] %v1848
          %1888 = vst [vmem:[%s1885 + $0x10] sm:$0xff] %v1851
          %1889 = vst [vmem:[%s1885 + $0x18] sm:$0xff] %v1853
          %1890 = vst [vmem:[%s1885 + $0x20] sm:$0xff] %v1856
          %1891 = vst [vmem:[%s1885 + $0x28] sm:$0xff] %v1858
          %1892 = vst [vmem:[%s1885 + $0x30] sm:$0xff] %v1861
          %1893 = vst [vmem:[%s1885 + $0x38] sm:$0xff] %v1863
          %1894 = vst [vmem:[%s1885 + $0x40] sm:$0xff] %v1866
          %1895 = vst [vmem:[%s1885 + $0x48] sm:$0xff] %v1868
          %1896 = vst [vmem:[%s1885 + $0x50] sm:$0xff] %v1871
          %1897 = vst [vmem:[%s1885 + $0x58] sm:$0xff] %v1873
          %1898 = vst [vmem:[%s1885 + $0x60] sm:$0xff] %v1876
          %1899 = vst [vmem:[%s1885 + $0x68] sm:$0xff] %v1878
          %1900 = vst [vmem:[%s1885 + $0x70] sm:$0xff] %v1881
          %1901 = vst [vmem:[%s1885 + $0x78] sm:$0xff] %v1883
          %v1902 = vld [vmem:[#allocation5] sm:$0x3]
          %v1903 = vadd.f32 %v1846, %v1848
          %v1904 = vadd.f32 %v1903, %v1851
          %v1905 = vadd.f32 %v1904, %v1853
          %v1906 = vadd.f32 %v1905, %v1856
          %v1907 = vadd.f32 %v1906, %v1858
          %v1908 = vadd.f32 %v1907, %v1861
          %v1909 = vadd.f32 %v1908, %v1863
          %v1910 = vadd.f32 %v1909, %v1866
          %v1911 = vadd.f32 %v1910, %v1868
          %v1912 = vadd.f32 %v1911, %v1871
          %v1913 = vadd.f32 %v1912, %v1873
          %v1914 = vadd.f32 %v1913, %v1876
          %v1915 = vadd.f32 %v1914, %v1878
          %v1916 = vadd.f32 %v1915, %v1881
          %v1917 = vadd.f32 %v1916, %v1883
          %v1918 = vrot.slane %v1917, 4
          %v1919 = vadd.f32 %v1917, %v1918
          %v1920 = vrot.slane %v1919, 2
          %v1921 = vadd.f32 %v1919, %v1920
          %v1922 = vrot.slane %v1921, 1
          %v1923 = vadd.f32 %v1921, %v1922
          %v1924 = vmul.f32 %v1846, %v1846
          %v1925 = vmul.f32 %v1848, %v1848
          %v1926 = vmul.f32 %v1851, %v1851
          %v1927 = vmul.f32 %v1853, %v1853
          %v1928 = vmul.f32 %v1856, %v1856
          %v1929 = vmul.f32 %v1858, %v1858
          %v1930 = vmul.f32 %v1861, %v1861
          %v1931 = vmul.f32 %v1863, %v1863
          %v1932 = vmul.f32 %v1866, %v1866
          %v1933 = vmul.f32 %v1868, %v1868
          %v1934 = vmul.f32 %v1871, %v1871
          %v1935 = vmul.f32 %v1873, %v1873
          %v1936 = vmul.f32 %v1876, %v1876
          %v1937 = vmul.f32 %v1878, %v1878
          %v1938 = vmul.f32 %v1881, %v1881
          %v1939 = vmul.f32 %v1883, %v1883
          %v1940 = vadd.f32 %v1924, %v1925
          %v1941 = vadd.f32 %v1940, %v1926
          %v1942 = vadd.f32 %v1941, %v1927
          %v1943 = vadd.f32 %v1942, %v1928
          %v1944 = vadd.f32 %v1943, %v1929
          %v1945 = vadd.f32 %v1944, %v1930
          %v1946 = vadd.f32 %v1945, %v1931
          %v1947 = vadd.f32 %v1946, %v1932
          %v1948 = vadd.f32 %v1947, %v1933
          %v1949 = vadd.f32 %v1948, %v1934
          %v1950 = vadd.f32 %v1949, %v1935
          %v1951 = vadd.f32 %v1950, %v1936
          %v1952 = vadd.f32 %v1951, %v1937
          %v1953 = vadd.f32 %v1952, %v1938
          %v1954 = vadd.f32 %v1953, %v1939
          %v1955 = vrot.slane %v1954, 4
          %v1956 = vadd.f32 %v1954, %v1955
          %v1957 = vrot.slane %v1956, 2
          %v1958 = vadd.f32 %v1956, %v1957
          %v1959 = vrot.slane %v1958, 1
          %v1960 = vadd.f32 %v1958, %v1959
          %vm1961 = vcmask 1040384
          %v1962 = vsel %vm1961, %v1923, %v1960
          %v1963 = vadd.f32 %v1902, %v1962
          %1964 = vst [vmem:[#allocation5] sm:$0x3] %v1963
        $region80: #{projection_head.1} parent=47 // pred_fallthru
          _
        %p1965 = scmp.eq.s32.totalorder %s30, 2
        // Predicated region
        $region85: #{projection_head.1} parent=47 // pred_check
          %p1966 = pneg %p1965
        $region86: #{projection_head.1} parent=47 // pred_check_branch
          %1968 = sbr.rel (%p1966) target = $region88
        $region87: #{projection_head.1} parent=47 // pred_region
          %p1969 = scmp.eq.s32.totalorder %s31, 0
          // Predicated region
          $region89: #{projection_head.1} parent=87 // pred_check
            %p1970 = pneg %p1969
          $region90: #{projection_head.1} parent=87 // pred_check_branch
            %1972 = sbr.rel (%p1970) target = $region92
          $region91: #{projection_head.1} parent=87 // pred_region
            %v1973 = vld [vmem:[#allocation5] sm:$0x1]
            %v1974 = vrcp.pop 256.0
            %v1975 = vmul.f32 256.0, %v1974
            %v1976 = vsub.f32 1.0, %v1975
            %v1977 = vmul.f32 %v1974, %v1976
            %v1978 = vadd.f32 %v1974, %v1977
            %vm1979 = vweird.f32 %v1974
            %v1980 = vsel %vm1979, %v1974, %v1978
            %v1981 = vmul.f32 %v1973, %v1980
            %v1982 = vld [vmem:[#allocation5 + $0x1] sm:$0x1]
            %v1983 = vmul.f32 %v1982, %v1980
            %v1984 = vmul.f32 %v1981, %v1981
            %v1985 = vsub.f32 %v1983, %v1984
            %v1986 = vmax.f32 %v1985, 0.0
            %v1987 = vld [vmem:[%s5] sm:$0x1]
            %v1988 = vadd.f32 %v1986, 1e-05
            %v1989 = vrsqrt.pop %v1988
            %v1990 = vmul.f32 %v1989, %v1988
            %v1991 = vmul.f32 %v1990, %v1989
            %v1992 = vmul.f32 0.5, %v1991
            %v1993 = vsub.f32 1.5, %v1992
            %v1994 = vmul.f32 %v1989, %v1993
            %vm1995 = vweird.f32 %v1988
            %vm1996 = vweird.f32 %v1989
            %vm1997 = vmor %vm1995, %vm1996
            %v1998 = vsel %vm1997, %v1989, %v1994
            %v1999 = vmul.f32 %v1987, %v1998
            %v2000 = vld [vmem:[#allocation14] sm:$0x1]
            %v2001 = vmul.f32 %v1981, %v1999
            %v2002 = vsub.f32 %v2000, %v2001
            %v2004 = vperm.slane %v2002, 0
            %vm2006 = vcmask 1040384
            %v2007 = vsel %vm2006, %v1999, %v2004
            %2008 = vst [vmem:[#allocation5] sm:$0x3] %v2007
          $region92: #{projection_head.1} parent=87 // pred_fallthru
            _
          %s2009 = scalar_lea.vmem [#allocation3], %s390
          %v2010 = vld [vmem:[%s2009] sm:$0xff]
          %v2011 = vld [vmem:[%s2009 + $0x8] sm:$0xff]
          %v2012 = vld [vmem:[%s2009 + $0x10] sm:$0xff]
          %v2013 = vld [vmem:[%s2009 + $0x18] sm:$0xff]
          %v2014 = vld [vmem:[%s2009 + $0x20] sm:$0xff]
          %v2015 = vld [vmem:[%s2009 + $0x28] sm:$0xff]
          %v2016 = vld [vmem:[%s2009 + $0x30] sm:$0xff]
          %v2017 = vld [vmem:[%s2009 + $0x38] sm:$0xff]
          %v2018 = vld [vmem:[%s2009 + $0x40] sm:$0xff]
          %v2019 = vld [vmem:[%s2009 + $0x48] sm:$0xff]
          %v2020 = vld [vmem:[%s2009 + $0x50] sm:$0xff]
          %v2021 = vld [vmem:[%s2009 + $0x58] sm:$0xff]
          %v2022 = vld [vmem:[%s2009 + $0x60] sm:$0xff]
          %v2023 = vld [vmem:[%s2009 + $0x68] sm:$0xff]
          %v2024 = vld [vmem:[%s2009 + $0x70] sm:$0xff]
          %v2025 = vld [vmem:[%s2009 + $0x78] sm:$0xff]
          %v2026 = vld [vmem:[#allocation5] sm:$0x1]
          %v2027 = vperm.slane %v2026, 0
          %v2028 = vmul.f32 %v2010, %v2027
          %v2029 = vmul.f32 %v2011, %v2027
          %v2030 = vmul.f32 %v2012, %v2027
          %v2031 = vmul.f32 %v2013, %v2027
          %v2032 = vmul.f32 %v2014, %v2027
          %v2033 = vmul.f32 %v2015, %v2027
          %v2034 = vmul.f32 %v2016, %v2027
          %v2035 = vmul.f32 %v2017, %v2027
          %v2036 = vmul.f32 %v2018, %v2027
          %v2037 = vmul.f32 %v2019, %v2027
          %v2038 = vmul.f32 %v2020, %v2027
          %v2039 = vmul.f32 %v2021, %v2027
          %v2040 = vmul.f32 %v2022, %v2027
          %v2041 = vmul.f32 %v2023, %v2027
          %v2042 = vmul.f32 %v2024, %v2027
          %v2043 = vmul.f32 %v2025, %v2027
          %v2044 = vld [vmem:[#allocation5 + $0x1] sm:$0x1]
          %v2045 = vperm.slane %v2044, 0
          %v2046 = vadd.f32 %v2028, %v2045
          %v2047 = vadd.f32 %v2029, %v2045
          %v2048 = vadd.f32 %v2030, %v2045
          %v2049 = vadd.f32 %v2031, %v2045
          %v2050 = vadd.f32 %v2032, %v2045
          %v2051 = vadd.f32 %v2033, %v2045
          %v2052 = vadd.f32 %v2034, %v2045
          %v2053 = vadd.f32 %v2035, %v2045
          %v2054 = vadd.f32 %v2036, %v2045
          %v2055 = vadd.f32 %v2037, %v2045
          %v2056 = vadd.f32 %v2038, %v2045
          %v2057 = vadd.f32 %v2039, %v2045
          %v2058 = vadd.f32 %v2040, %v2045
          %v2059 = vadd.f32 %v2041, %v2045
          %v2060 = vadd.f32 %v2042, %v2045
          %v2061 = vadd.f32 %v2043, %v2045
          %2062 = vst [vmem:[%s383] sm:$0xff] %v2046
          %2063 = vst [vmem:[%s383 + $0x8] sm:$0xff] %v2047
          %2064 = vst [vmem:[%s383 + $0x10] sm:$0xff] %v2048
          %2065 = vst [vmem:[%s383 + $0x18] sm:$0xff] %v2049
          %2066 = vst [vmem:[%s383 + $0x20] sm:$0xff] %v2050
          %2067 = vst [vmem:[%s383 + $0x28] sm:$0xff] %v2051
          %2068 = vst [vmem:[%s383 + $0x30] sm:$0xff] %v2052
          %2069 = vst [vmem:[%s383 + $0x38] sm:$0xff] %v2053
          %2070 = vst [vmem:[%s383 + $0x40] sm:$0xff] %v2054
          %2071 = vst [vmem:[%s383 + $0x48] sm:$0xff] %v2055
          %2072 = vst [vmem:[%s383 + $0x50] sm:$0xff] %v2056
          %2073 = vst [vmem:[%s383 + $0x58] sm:$0xff] %v2057
          %2074 = vst [vmem:[%s383 + $0x60] sm:$0xff] %v2058
          %2075 = vst [vmem:[%s383 + $0x68] sm:$0xff] %v2059
          %2076 = vst [vmem:[%s383 + $0x70] sm:$0xff] %v2060
          %2077 = vst [vmem:[%s383 + $0x78] sm:$0xff] %v2061
        $region88: #{projection_head.1} parent=47 // pred_fallthru
          _
        %s2078 = sand.u32 %s206, 1
        %s2079 = scalar_lea.sflag [#allocation8], %s2078
        %s2080 = sand.u32 %s206, 1
        %s2081 = smul.addr %s2080, 128
        %s2082 = scalar_lea.vmem [#allocation15], %s2081
        // Predicated region
        $region93: #{projection_head.1} parent=47 // pred_check
          %p2083 = pneg %p216
        $region94: #{projection_head.1} parent=47 // pred_check_branch
          %2085 = sbr.rel (%p2083) target = $region96
        $region95: #{projection_head.1} parent=47 // pred_region
          %p2086 = scmp.eq.s32.totalorder %s30, 2
          %s2087 = scalar_select %p2086, %s31, 0
          %s2088 = smul.u32 16, %s2087
          %2090 = vsyncadd %s2079, 0
          %s2091 = smul.addr %s2088, 8
          %s2092 = scalar_lea.hbm %s7, %s2091
          %s2093 = sshll.u32 %s2082, 4
          %s2094 = int_to_ptr.vmem [resolvable:$true] %s2093
          %s2095 = sshll.u32 %s2092, 4
          %s2096 = int_to_ptr.hbm [resolvable:$true] %s2095
          %2101 = dma.vmem_to_hbm [thread:$0]  %s2094, 2048, %s2096, %s2079, 128, 128, 8
        $region96: #{projection_head.1} parent=47 // pred_fallthru
          _
      $region48: #{projection_head.1} parent=5 // pred_fallthru
        _
      %p2102 = scmp.le.s32.totalorder 2, %s21
      // Predicated region
      $region97: #{projection_head.1} parent=5 // pred_check
        %p2103 = pneg %p2102
      $region98: #{projection_head.1} parent=5 // pred_check_branch
        %2105 = sbr.rel (%p2103) target = $region100
      $region99: #{projection_head.1} parent=5 // pred_region
        %s2106 = ssub.s32 %s21, 2
        // Predicated region
        $region101: #{projection_head.1} parent=99 // pred_check
          %p2107 = pneg %p222
        $region102: #{projection_head.1} parent=99 // pred_check_branch
          %2109 = sbr.rel (%p2107) target = $region104
        $region103: #{projection_head.1} parent=99 // pred_region
          %s2110 = sand.u32 %s207, 1
          %s2111 = scalar_lea.sflag [#allocation8], %s2110
          %s2112 = sand.u32 %s207, 1
          %s2113 = smul.addr %s2112, 128
          %s2114 = scalar_lea.vmem [#allocation15], %s2113
          %2116 = dma.done %s2111, 2048
        $region104: #{projection_head.1} parent=99 // pred_fallthru
          _
      $region100: #{projection_head.1} parent=5 // pred_fallthru
        _
    $region6: #{projection_head.1} parent=1 // loop_footer
      %s25 = sadd.s32 1, %s21
    $region7: #{projection_head.1} parent=1 // loop_footer_branch
      %20 = sbr.rel target = $region3
    $region8: #{projection_head.1} parent=1 // loop_exit
      _
    %2117 = vsyncpa [#allocation7], 1
    %s2118 = scalar_lea.sflag [#allocation7], 1
    %2119 = vsyncpa %s2118, 1
    %2120 = vsyncpa [#allocation10], 1
    %2121 = vsyncpa [#allocation13], 1
    %2122 = vsyncpa [#allocation8], 1
    %s2123 = scalar_lea.sflag [#allocation8], 1
    %2124 = vsyncpa %s2123, 1

</llo_original>
